<compile_context>
chip_gen: v5e
topology: v5e:2x2
jax: 0.10.0
libtpu: 0.0.40
codegen_flags: <defaults>
</compile_context>

<pallas_src>
import jax
import jax.numpy as jnp
import numpy as np
from jax.experimental import pallas as pl
from jax.experimental.pallas import tpu as pltpu


# ----------------------------------------------------------------------------
# Host-side layout plumbing (run once per parameter set)
# ----------------------------------------------------------------------------
def _bilinear_matrix(n_out, n_in, align_corners=True):
    """(n_out, n_in) interpolation matrix matching torch bilinear."""
    out_idx = jnp.arange(n_out, dtype=jnp.float32)
    if align_corners:
        scale = (n_in - 1) / (n_out - 1) if n_out > 1 else 0.0
        src = out_idx * scale
    else:
        scale = n_in / n_out
        src = jnp.clip((out_idx + 0.5) * scale - 0.5, 0.0, float(n_in - 1))
    i0 = jnp.clip(jnp.floor(src).astype(jnp.int32), 0, n_in - 1)
    i1 = jnp.clip(i0 + 1, 0, n_in - 1)
    frac = src - i0.astype(jnp.float32)
    return (jax.nn.one_hot(i0, n_in, dtype=jnp.float32) * (1.0 - frac)[:, None]
            + jax.nn.one_hot(i1, n_in, dtype=jnp.float32) * frac[:, None])


def _pack_conv3x3(w_hwio, b, W):
    """Pack a 3x3 'SAME' conv as banded lane-dense matrices.

    Returns:
      wb:   (W*Cin, 3*W*Cout)  -- for dy in {0,1,2}, column block dy holds
            Wband[dy][q*Cin+ci, w*Cout+co] = w[dy, q-w+1, ci, co] (0 outside the
            3-tap band; the missing boundary taps ARE the zero padding).
      brow: (1, W*Cout)        -- bias tiled over the width axis.
    """
    cin, cout = w_hwio.shape[2], w_hwio.shape[3]
    blocks = []
    for dy in range(3):
        m = jnp.zeros((W * cin, W * cout), jnp.float32)
        for dx in range(3):
            # S[q, w] = 1 iff q == w + dx - 1   (source column of tap dx)
            S = jnp.eye(W, W, k=1 - dx, dtype=jnp.float32)
            m = m + jnp.kron(S, w_hwio[dy, dx].astype(jnp.float32))
        blocks.append(m)
    wb = jnp.concatenate(blocks, axis=1)                     # (W*cin, 3*W*cout)
    brow = jnp.tile(b.astype(jnp.float32), W).reshape(1, W * cout)
    return wb, brow


# ----------------------------------------------------------------------------
# Fused FeatureFusionBlock forward
# ----------------------------------------------------------------------------
def feature_fusion_block(params, *xs, size=None, align_corners=True):
    """params: {'rcu1': (w1,b1,w2,b2) HWIO (optional), 'rcu2': ..., 'w_oc': (C,Co), 'b_oc': (Co,)}."""
    assert len(xs) in (1, 2)
    x0 = xs[0]
    B, H, W, C = x0.shape
    has_skip = len(xs) == 2
    w_oc = params["w_oc"].astype(jnp.float32)
    b_oc = params["b_oc"].astype(jnp.float32)
    Co = w_oc.shape[-1]
    Ho, Wo = (2 * H, 2 * W) if size is None else size
    WC, WoCo = W * C, Wo * Co

    # ---- pack parameters (pure layout work, done once) ----
    packed = []
    if has_skip:
        packed += list(_pack_conv3x3(params["rcu1"][0], params["rcu1"][1], W))
        packed += list(_pack_conv3x3(params["rcu1"][2], params["rcu1"][3], W))
    packed += list(_pack_conv3x3(params["rcu2"][0], params["rcu2"][1], W))
    packed += list(_pack_conv3x3(params["rcu2"][2], params["rcu2"][3], W))

    A_h = _bilinear_matrix(Ho, H, align_corners)                       # (Ho, H)
    A_w = _bilinear_matrix(Wo, W, align_corners)                       # (Wo, W)
    # width interp fused with the 1x1 out_conv: (W*C, Wo*Co)
    kwc = jnp.einsum("ow,ij->wioj", A_w, w_oc).reshape(WC, WoCo)
    boc = jnp.tile(b_oc, Wo).reshape(1, WoCo)

    # ---- fused kernel: RCU1 + skip-add + RCU2 + upsample + out_conv ----
    def kernel(*refs):
        if has_skip:
            (x0_ref, x1_ref,
             w1a, bb1a, w1b, bb1b,
             w2a, bb2a, w2b, bb2b,
             ah_ref, kwc_ref, boc_ref, o_ref) = refs
        else:
            (x0_ref,
             w2a, bb2a, w2b, bb2b,
             ah_ref, kwc_ref, boc_ref, o_ref) = refs

        # (H, H) single-row shift matrices built on-chip: they realize the
        # dy = 0 / dy = 2 conv taps (rows i-1 / i+1) with zero row-padding.
        rows = jax.lax.broadcasted_iota(jnp.int32, (H, H), 0)
        cols = jax.lax.broadcasted_iota(jnp.int32, (H, H), 1)
        shift_dn = jnp.where(rows == cols + 1, 1.0, 0.0).astype(jnp.float32)
        shift_up = jnp.where(cols == rows + 1, 1.0, 0.0).astype(jnp.float32)

        def conv3x3(a, wb_ref, brow_ref):
            # a: (H, W*C) f32; one lane-dense matmul covers all 3 column taps
            # of all 3 row taps; row taps are combined with two (H,H) matmuls.
            q = jnp.dot(a, wb_ref[...], preferred_element_type=jnp.float32)   # (H, 3*WC)
            p0 = q[:, 0 * WC:1 * WC]
            p1 = q[:, 1 * WC:2 * WC]
            p2 = q[:, 2 * WC:3 * WC]
            return (p1
                    + jnp.dot(shift_dn, p0, preferred_element_type=jnp.float32)
                    + jnp.dot(shift_up, p2, preferred_element_type=jnp.float32)
                    + brow_ref[...])

        def rcu(x, wa, ba, wb, bb):
            h = conv3x3(jnp.maximum(x, 0.0), wa, ba)
            h = conv3x3(jnp.maximum(h, 0.0), wb, bb)
            return h + x

        y = x0_ref[0].astype(jnp.float32)                      # (H, W*C)
        if has_skip:
            y = y + rcu(x1_ref[0].astype(jnp.float32), w1a, bb1a, w1b, bb1b)
        y = rcu(y, w2a, bb2a, w2b, bb2b)

        # separable bilinear upsample (+ fused 1x1 out_conv), lane-dense output
        uh = jnp.dot(ah_ref[...], y, preferred_element_type=jnp.float32)       # (Ho, W*C)
        out = jnp.dot(uh, kwc_ref[...], preferred_element_type=jnp.float32) + boc_ref[...]
        o_ref[0] = out.astype(o_ref.dtype)                     # (Ho, Wo*Co)

    xspec = pl.BlockSpec((1, H, WC), lambda b: (b, 0, 0))
    wspec = pl.BlockSpec((WC, 3 * WC), lambda b: (0, 0))
    bspec = pl.BlockSpec((1, WC), lambda b: (0, 0))

    inputs = [x0.reshape(B, H, WC)]
    in_specs = [xspec]
    if has_skip:
        inputs.append(xs[1].reshape(B, H, WC))
        in_specs.append(xspec)
    inputs += packed
    in_specs += [wspec, bspec] * (4 if has_skip else 2)
    inputs += [A_h, kwc, boc]
    in_specs += [pl.BlockSpec((Ho, H), lambda b: (0, 0)),
                 pl.BlockSpec((WC, WoCo), lambda b: (0, 0)),
                 pl.BlockSpec((1, WoCo), lambda b: (0, 0))]

    out = pl.pallas_call(
        kernel,
        out_shape=jax.ShapeDtypeStruct((B, Ho, WoCo), x0.dtype),
        grid_spec=pltpu.PrefetchScalarGridSpec(
            num_scalar_prefetch=0,
            grid=(B,),
            in_specs=in_specs,
            out_specs=pl.BlockSpec((1, Ho, WoCo), lambda b: (b, 0, 0)),
        ),
        compiler_params=pltpu.CompilerParams(
            dimension_semantics=("parallel",),
            vmem_limit_bytes=32 * 1024 * 1024,
        ),
    )(*inputs)
    return out.reshape(B, Ho, Wo, Co)


# ----------------------------------------------------------------------------
# Pure-JAX reference (mirrors the PyTorch forward exactly, NHWC)
# ----------------------------------------------------------------------------
def _conv3x3_ref(x, w_hwio, b):
    y = jax.lax.conv_general_dilated(
        x, w_hwio, (1, 1), "SAME", dimension_numbers=("NHWC", "HWIO", "NHWC"))
    return y + b.reshape(1, 1, 1, -1)


def _rcu_ref(x, w1, b1, w2, b2):
    out = jnp.maximum(x, 0.0)
    out = _conv3x3_ref(out, w1, b1)
    out = jnp.maximum(out, 0.0)
    out = _conv3x3_ref(out, w2, b2)
    return out + x


def _ffb_ref(raw, x0, x1):
    out = x0 + _rcu_ref(x1, *raw["rcu1"])
    out = _rcu_ref(out, *raw["rcu2"])
    B, H, W, C = out.shape
    A_h = _bilinear_matrix(2 * H, H, True)
    A_w = _bilinear_matrix(2 * W, W, True)
    out = jnp.einsum("oh,pw,bhwc->bopc", A_h, A_w, out)
    return jnp.einsum("bhwc,cd->bhwd", out, raw["w_oc"]) + raw["b_oc"].reshape(1, 1, 1, -1)


# ----------------------------------------------------------------------------
# main
# ----------------------------------------------------------------------------
if __name__ == "__main__":
    B, H, W, C = 2, 16, 16, 8          # features=8, expand=False -> out_features=8
    key = jax.random.PRNGKey(0)
    ks = jax.random.split(key, 12)

    def conv_w(k, cin, cout):
        return jax.random.normal(k, (3, 3, cin, cout), jnp.float32) * 0.1

    raw = {
        "rcu1": (conv_w(ks[0], C, C), jax.random.normal(ks[1], (C,)) * 0.05,
                 conv_w(ks[2], C, C), jax.random.normal(ks[3], (C,)) * 0.05),
        "rcu2": (conv_w(ks[4], C, C), jax.random.normal(ks[5], (C,)) * 0.05,
                 conv_w(ks[6], C, C), jax.random.normal(ks[7], (C,)) * 0.05),
        "w_oc": jax.random.normal(ks[8], (C, C), jnp.float32) * 0.1,   # 1x1 conv (cin, cout)
        "b_oc": jax.random.normal(ks[9], (C,)) * 0.05,
    }

    # inputs (NHWC); the PyTorch module would see these as NCHW permutations
    x0 = jax.random.normal(ks[10], (B, H, W, C), jnp.float32)
    x1 = jax.random.normal(ks[11], (B, H, W, C), jnp.float32)

    out = jax.block_until_ready(feature_fusion_block(raw, x0, x1))
    ref = jax.block_until_ready(_ffb_ref(raw, x0, x1))

    assert out.shape == (B, 2 * H, 2 * W, C), out.shape
    np.testing.assert_allclose(np.asarray(out), np.asarray(ref), rtol=1e-4, atol=1e-4)

    print("KERNEL_OK")
</pallas_src>

<mosaic_0001>
module attributes {stable_mosaic.version = 11 : i64} {
  func.func @kernel(%arg0: i32, %arg1: memref<1x16x128xf32, #tpu.memory_space<vmem>>, %arg2: memref<1x16x128xf32, #tpu.memory_space<vmem>>, %arg3: memref<128x384xf32, #tpu.memory_space<vmem>>, %arg4: memref<1x128xf32, #tpu.memory_space<vmem>>, %arg5: memref<128x384xf32, #tpu.memory_space<vmem>>, %arg6: memref<1x128xf32, #tpu.memory_space<vmem>>, %arg7: memref<128x384xf32, #tpu.memory_space<vmem>>, %arg8: memref<1x128xf32, #tpu.memory_space<vmem>>, %arg9: memref<128x384xf32, #tpu.memory_space<vmem>>, %arg10: memref<1x128xf32, #tpu.memory_space<vmem>>, %arg11: memref<32x16xf32, #tpu.memory_space<vmem>>, %arg12: memref<128x256xf32, #tpu.memory_space<vmem>>, %arg13: memref<1x256xf32, #tpu.memory_space<vmem>>, %arg14: memref<1x32x256xf32, #tpu.memory_space<vmem>>) attributes {dimension_semantics = [#tpu.dimension_semantics<parallel>], iteration_bounds = array<i64: 2>, scalar_prefetch = 0 : i64, scratch_operands = 0 : i64, tpu.core_type = #tpu.core_type<tc>, window_params = [{transform_indices = @transform_0, window_bounds = array<i64: 1, 16, 128>}, {transform_indices = @transform_1, window_bounds = array<i64: 1, 16, 128>}, {pipeline_mode = #tpu.pipeline_mode<synchronous>, transform_indices = @transform_2, window_bounds = array<i64: 128, 384>}, {pipeline_mode = #tpu.pipeline_mode<synchronous>, transform_indices = @transform_3, window_bounds = array<i64: 1, 128>}, {pipeline_mode = #tpu.pipeline_mode<synchronous>, transform_indices = @transform_4, window_bounds = array<i64: 128, 384>}, {pipeline_mode = #tpu.pipeline_mode<synchronous>, transform_indices = @transform_5, window_bounds = array<i64: 1, 128>}, {pipeline_mode = #tpu.pipeline_mode<synchronous>, transform_indices = @transform_6, window_bounds = array<i64: 128, 384>}, {pipeline_mode = #tpu.pipeline_mode<synchronous>, transform_indices = @transform_7, window_bounds = array<i64: 1, 128>}, {pipeline_mode = #tpu.pipeline_mode<synchronous>, transform_indices = @transform_8, window_bounds = array<i64: 128, 384>}, {pipeline_mode = #tpu.pipeline_mode<synchronous>, transform_indices = @transform_9, window_bounds = array<i64: 1, 128>}, {pipeline_mode = #tpu.pipeline_mode<synchronous>, transform_indices = @transform_10, window_bounds = array<i64: 32, 16>}, {pipeline_mode = #tpu.pipeline_mode<synchronous>, transform_indices = @transform_11, window_bounds = array<i64: 128, 256>}, {pipeline_mode = #tpu.pipeline_mode<synchronous>, transform_indices = @transform_12, window_bounds = array<i64: 1, 256>}, {transform_indices = @transform_13, window_bounds = array<i64: 1, 32, 256>}]} {
    %0 = tpu.iota {dimensions = array<i32: 0>} : vector<16x16xi32>
    %1 = tpu.iota {dimensions = array<i32: 1>} : vector<16x16xi32>
    %c1_i32 = arith.constant 1 : i32
    %2 = vector.broadcast %c1_i32 : i32 to vector<16x16xi32>
    %3 = arith.addi %1, %2 : vector<16x16xi32>
    %4 = arith.cmpi eq, %0, %3 : vector<16x16xi32>
    %cst = arith.constant 1.000000e+00 : f32
    %cst_0 = arith.constant 0.000000e+00 : f32
    %5 = vector.broadcast %cst : f32 to vector<16x16xf32>
    %6 = vector.broadcast %cst_0 : f32 to vector<16x16xf32>
    %7 = arith.select %4, %5, %6 : vector<16x16xi1>, vector<16x16xf32>
    %c1_i32_1 = arith.constant 1 : i32
    %8 = vector.broadcast %c1_i32_1 : i32 to vector<16x16xi32>
    %9 = arith.addi %0, %8 : vector<16x16xi32>
    %10 = arith.cmpi eq, %1, %9 : vector<16x16xi32>
    %cst_2 = arith.constant 1.000000e+00 : f32
    %cst_3 = arith.constant 0.000000e+00 : f32
    %11 = vector.broadcast %cst_2 : f32 to vector<16x16xf32>
    %12 = vector.broadcast %cst_3 : f32 to vector<16x16xf32>
    %13 = arith.select %10, %11, %12 : vector<16x16xi1>, vector<16x16xf32>
    %c0 = arith.constant 0 : index
    %c0_4 = arith.constant 0 : index
    %c0_5 = arith.constant 0 : index
    %14 = vector.load %arg1[%c0, %c0_4, %c0_5] : memref<1x16x128xf32, #tpu.memory_space<vmem>>, vector<1x16x128xf32>
    %15 = vector.shape_cast %14 : vector<1x16x128xf32> to vector<16x128xf32>
    %c0_6 = arith.constant 0 : index
    %c0_7 = arith.constant 0 : index
    %c0_8 = arith.constant 0 : index
    %16 = vector.load %arg2[%c0_6, %c0_7, %c0_8] : memref<1x16x128xf32, #tpu.memory_space<vmem>>, vector<1x16x128xf32>
    %17 = vector.shape_cast %16 : vector<1x16x128xf32> to vector<16x128xf32>
    %cst_9 = arith.constant 0.000000e+00 : f32
    %18 = vector.broadcast %cst_9 : f32 to vector<16x128xf32>
    %19 = arith.maximumf %17, %18 : vector<16x128xf32>
    %c0_10 = arith.constant 0 : index
    %c0_11 = arith.constant 0 : index
    %20 = vector.load %arg3[%c0_10, %c0_11] : memref<128x384xf32, #tpu.memory_space<vmem>>, vector<128x384xf32>
    %cst_12 = arith.constant dense<0.000000e+00> : vector<16x384xf32>
    %21 = tpu.matmul %19, %20, %cst_12 {dimension_numbers = #tpu.dot_dimension_numbers<[1], [0], [0], [1], [0, 0, 1, 1], [], []>} : vector<16x128xf32>, vector<128x384xf32>, vector<16x384xf32> -> vector<16x384xf32>
    %22 = vector.extract_strided_slice %21 {offsets = [0, 0], sizes = [16, 128], strides = [1, 1]} : vector<16x384xf32> to vector<16x128xf32>
    %23 = vector.extract_strided_slice %21 {offsets = [0, 128], sizes = [16, 128], strides = [1, 1]} : vector<16x384xf32> to vector<16x128xf32>
    %24 = vector.extract_strided_slice %21 {offsets = [0, 256], sizes = [16, 128], strides = [1, 1]} : vector<16x384xf32> to vector<16x128xf32>
    %cst_13 = arith.constant dense<0.000000e+00> : vector<16x128xf32>
    %25 = tpu.matmul %7, %22, %cst_13 {dimension_numbers = #tpu.dot_dimension_numbers<[1], [0], [0], [1], [0, 0, 1, 1], [], []>} : vector<16x16xf32>, vector<16x128xf32>, vector<16x128xf32> -> vector<16x128xf32>
    %26 = arith.addf %23, %25 : vector<16x128xf32>
    %cst_14 = arith.constant dense<0.000000e+00> : vector<16x128xf32>
    %27 = tpu.matmul %13, %24, %cst_14 {dimension_numbers = #tpu.dot_dimension_numbers<[1], [0], [0], [1], [0, 0, 1, 1], [], []>} : vector<16x16xf32>, vector<16x128xf32>, vector<16x128xf32> -> vector<16x128xf32>
    %28 = arith.addf %26, %27 : vector<16x128xf32>
    %c0_15 = arith.constant 0 : index
    %c0_16 = arith.constant 0 : index
    %29 = vector.load %arg4[%c0_15, %c0_16] : memref<1x128xf32, #tpu.memory_space<vmem>>, vector<1x128xf32>
    %30 = vector.broadcast %29 : vector<1x128xf32> to vector<16x128xf32>
    %31 = arith.addf %28, %30 : vector<16x128xf32>
    %cst_17 = arith.constant 0.000000e+00 : f32
    %32 = vector.broadcast %cst_17 : f32 to vector<16x128xf32>
    %33 = arith.maximumf %31, %32 : vector<16x128xf32>
    %c0_18 = arith.constant 0 : index
    %c0_19 = arith.constant 0 : index
    %34 = vector.load %arg5[%c0_18, %c0_19] : memref<128x384xf32, #tpu.memory_space<vmem>>, vector<128x384xf32>
    %cst_20 = arith.constant dense<0.000000e+00> : vector<16x384xf32>
    %35 = tpu.matmul %33, %34, %cst_20 {dimension_numbers = #tpu.dot_dimension_numbers<[1], [0], [0], [1], [0, 0, 1, 1], [], []>} : vector<16x128xf32>, vector<128x384xf32>, vector<16x384xf32> -> vector<16x384xf32>
    %36 = vector.extract_strided_slice %35 {offsets = [0, 0], sizes = [16, 128], strides = [1, 1]} : vector<16x384xf32> to vector<16x128xf32>
    %37 = vector.extract_strided_slice %35 {offsets = [0, 128], sizes = [16, 128], strides = [1, 1]} : vector<16x384xf32> to vector<16x128xf32>
    %38 = vector.extract_strided_slice %35 {offsets = [0, 256], sizes = [16, 128], strides = [1, 1]} : vector<16x384xf32> to vector<16x128xf32>
    %cst_21 = arith.constant dense<0.000000e+00> : vector<16x128xf32>
    %39 = tpu.matmul %7, %36, %cst_21 {dimension_numbers = #tpu.dot_dimension_numbers<[1], [0], [0], [1], [0, 0, 1, 1], [], []>} : vector<16x16xf32>, vector<16x128xf32>, vector<16x128xf32> -> vector<16x128xf32>
    %40 = arith.addf %37, %39 : vector<16x128xf32>
    %cst_22 = arith.constant dense<0.000000e+00> : vector<16x128xf32>
    %41 = tpu.matmul %13, %38, %cst_22 {dimension_numbers = #tpu.dot_dimension_numbers<[1], [0], [0], [1], [0, 0, 1, 1], [], []>} : vector<16x16xf32>, vector<16x128xf32>, vector<16x128xf32> -> vector<16x128xf32>
    %42 = arith.addf %40, %41 : vector<16x128xf32>
    %c0_23 = arith.constant 0 : index
    %c0_24 = arith.constant 0 : index
    %43 = vector.load %arg6[%c0_23, %c0_24] : memref<1x128xf32, #tpu.memory_space<vmem>>, vector<1x128xf32>
    %44 = vector.broadcast %43 : vector<1x128xf32> to vector<16x128xf32>
    %45 = arith.addf %42, %44 : vector<16x128xf32>
    %46 = arith.addf %45, %17 : vector<16x128xf32>
    %47 = arith.addf %15, %46 : vector<16x128xf32>
    %cst_25 = arith.constant 0.000000e+00 : f32
    %48 = vector.broadcast %cst_25 : f32 to vector<16x128xf32>
    %49 = arith.maximumf %47, %48 : vector<16x128xf32>
    %c0_26 = arith.constant 0 : index
    %c0_27 = arith.constant 0 : index
    %50 = vector.load %arg7[%c0_26, %c0_27] : memref<128x384xf32, #tpu.memory_space<vmem>>, vector<128x384xf32>
    %cst_28 = arith.constant dense<0.000000e+00> : vector<16x384xf32>
    %51 = tpu.matmul %49, %50, %cst_28 {dimension_numbers = #tpu.dot_dimension_numbers<[1], [0], [0], [1], [0, 0, 1, 1], [], []>} : vector<16x128xf32>, vector<128x384xf32>, vector<16x384xf32> -> vector<16x384xf32>
    %52 = vector.extract_strided_slice %51 {offsets = [0, 0], sizes = [16, 128], strides = [1, 1]} : vector<16x384xf32> to vector<16x128xf32>
    %53 = vector.extract_strided_slice %51 {offsets = [0, 128], sizes = [16, 128], strides = [1, 1]} : vector<16x384xf32> to vector<16x128xf32>
    %54 = vector.extract_strided_slice %51 {offsets = [0, 256], sizes = [16, 128], strides = [1, 1]} : vector<16x384xf32> to vector<16x128xf32>
    %cst_29 = arith.constant dense<0.000000e+00> : vector<16x128xf32>
    %55 = tpu.matmul %7, %52, %cst_29 {dimension_numbers = #tpu.dot_dimension_numbers<[1], [0], [0], [1], [0, 0, 1, 1], [], []>} : vector<16x16xf32>, vector<16x128xf32>, vector<16x128xf32> -> vector<16x128xf32>
    %56 = arith.addf %53, %55 : vector<16x128xf32>
    %cst_30 = arith.constant dense<0.000000e+00> : vector<16x128xf32>
    %57 = tpu.matmul %13, %54, %cst_30 {dimension_numbers = #tpu.dot_dimension_numbers<[1], [0], [0], [1], [0, 0, 1, 1], [], []>} : vector<16x16xf32>, vector<16x128xf32>, vector<16x128xf32> -> vector<16x128xf32>
    %58 = arith.addf %56, %57 : vector<16x128xf32>
    %c0_31 = arith.constant 0 : index
    %c0_32 = arith.constant 0 : index
    %59 = vector.load %arg8[%c0_31, %c0_32] : memref<1x128xf32, #tpu.memory_space<vmem>>, vector<1x128xf32>
    %60 = vector.broadcast %59 : vector<1x128xf32> to vector<16x128xf32>
    %61 = arith.addf %58, %60 : vector<16x128xf32>
    %cst_33 = arith.constant 0.000000e+00 : f32
    %62 = vector.broadcast %cst_33 : f32 to vector<16x128xf32>
    %63 = arith.maximumf %61, %62 : vector<16x128xf32>
    %c0_34 = arith.constant 0 : index
    %c0_35 = arith.constant 0 : index
    %64 = vector.load %arg9[%c0_34, %c0_35] : memref<128x384xf32, #tpu.memory_space<vmem>>, vector<128x384xf32>
    %cst_36 = arith.constant dense<0.000000e+00> : vector<16x384xf32>
    %65 = tpu.matmul %63, %64, %cst_36 {dimension_numbers = #tpu.dot_dimension_numbers<[1], [0], [0], [1], [0, 0, 1, 1], [], []>} : vector<16x128xf32>, vector<128x384xf32>, vector<16x384xf32> -> vector<16x384xf32>
    %66 = vector.extract_strided_slice %65 {offsets = [0, 0], sizes = [16, 128], strides = [1, 1]} : vector<16x384xf32> to vector<16x128xf32>
    %67 = vector.extract_strided_slice %65 {offsets = [0, 128], sizes = [16, 128], strides = [1, 1]} : vector<16x384xf32> to vector<16x128xf32>
    %68 = vector.extract_strided_slice %65 {offsets = [0, 256], sizes = [16, 128], strides = [1, 1]} : vector<16x384xf32> to vector<16x128xf32>
    %cst_37 = arith.constant dense<0.000000e+00> : vector<16x128xf32>
    %69 = tpu.matmul %7, %66, %cst_37 {dimension_numbers = #tpu.dot_dimension_numbers<[1], [0], [0], [1], [0, 0, 1, 1], [], []>} : vector<16x16xf32>, vector<16x128xf32>, vector<16x128xf32> -> vector<16x128xf32>
    %70 = arith.addf %67, %69 : vector<16x128xf32>
    %cst_38 = arith.constant dense<0.000000e+00> : vector<16x128xf32>
    %71 = tpu.matmul %13, %68, %cst_38 {dimension_numbers = #tpu.dot_dimension_numbers<[1], [0], [0], [1], [0, 0, 1, 1], [], []>} : vector<16x16xf32>, vector<16x128xf32>, vector<16x128xf32> -> vector<16x128xf32>
    %72 = arith.addf %70, %71 : vector<16x128xf32>
    %c0_39 = arith.constant 0 : index
    %c0_40 = arith.constant 0 : index
    %73 = vector.load %arg10[%c0_39, %c0_40] : memref<1x128xf32, #tpu.memory_space<vmem>>, vector<1x128xf32>
    %74 = vector.broadcast %73 : vector<1x128xf32> to vector<16x128xf32>
    %75 = arith.addf %72, %74 : vector<16x128xf32>
    %76 = arith.addf %75, %47 : vector<16x128xf32>
    %c0_41 = arith.constant 0 : index
    %c0_42 = arith.constant 0 : index
    %77 = vector.load %arg11[%c0_41, %c0_42] : memref<32x16xf32, #tpu.memory_space<vmem>>, vector<32x16xf32>
    %cst_43 = arith.constant dense<0.000000e+00> : vector<32x128xf32>
    %78 = tpu.matmul %77, %76, %cst_43 {dimension_numbers = #tpu.dot_dimension_numbers<[1], [0], [0], [1], [0, 0, 1, 1], [], []>} : vector<32x16xf32>, vector<16x128xf32>, vector<32x128xf32> -> vector<32x128xf32>
    %c0_44 = arith.constant 0 : index
    %c0_45 = arith.constant 0 : index
    %79 = vector.load %arg12[%c0_44, %c0_45] : memref<128x256xf32, #tpu.memory_space<vmem>>, vector<128x256xf32>
    %cst_46 = arith.constant dense<0.000000e+00> : vector<32x256xf32>
    %80 = tpu.matmul %78, %79, %cst_46 {dimension_numbers = #tpu.dot_dimension_numbers<[1], [0], [0], [1], [0, 0, 1, 1], [], []>} : vector<32x128xf32>, vector<128x256xf32>, vector<32x256xf32> -> vector<32x256xf32>
    %c0_47 = arith.constant 0 : index
    %c0_48 = arith.constant 0 : index
    %81 = vector.load %arg13[%c0_47, %c0_48] : memref<1x256xf32, #tpu.memory_space<vmem>>, vector<1x256xf32>
    %82 = vector.broadcast %81 : vector<1x256xf32> to vector<32x256xf32>
    %83 = arith.addf %80, %82 : vector<32x256xf32>
    %c0_49 = arith.constant 0 : index
    %c0_50 = arith.constant 0 : index
    %c0_51 = arith.constant 0 : index
    %84 = vector.load %arg14[%c0_49, %c0_50, %c0_51] : memref<1x32x256xf32, #tpu.memory_space<vmem>>, vector<1x32x256xf32>
    %85 = vector.shape_cast %84 : vector<1x32x256xf32> to vector<32x256xf32>
    %86 = vector.shape_cast %83 : vector<32x256xf32> to vector<1x32x256xf32>
    tpu.vector_store %arg14[%c0_49, %c0_50, %c0_51], %86 {strides = array<i32>} : memref<1x32x256xf32, #tpu.memory_space<vmem>>, vector<1x32x256xf32>,
    return
  }
  func.func @transform_0(%arg0: i32) -> (i32, i32, i32) {
    %c0_i32 = arith.constant 0 : i32
    %c0_i32_0 = arith.constant 0 : i32
    %c0_i32_1 = arith.constant 0 : i32
    return %arg0, %c0_i32, %c0_i32_0 : i32, i32, i32
  }
  func.func @transform_1(%arg0: i32) -> (i32, i32, i32) {
    %c0_i32 = arith.constant 0 : i32
    %c0_i32_0 = arith.constant 0 : i32
    %c0_i32_1 = arith.constant 0 : i32
    return %arg0, %c0_i32, %c0_i32_0 : i32, i32, i32
  }
  func.func @transform_2(%arg0: i32) -> (i32, i32) {
    %c0_i32 = arith.constant 0 : i32
    %c0_i32_0 = arith.constant 0 : i32
    %c0_i32_1 = arith.constant 0 : i32
    return %c0_i32, %c0_i32_0 : i32, i32
  }
  func.func @transform_3(%arg0: i32) -> (i32, i32) {
    %c0_i32 = arith.constant 0 : i32
    %c0_i32_0 = arith.constant 0 : i32
    %c0_i32_1 = arith.constant 0 : i32
    return %c0_i32, %c0_i32_0 : i32, i32
  }
  func.func @transform_4(%arg0: i32) -> (i32, i32) {
    %c0_i32 = arith.constant 0 : i32
    %c0_i32_0 = arith.constant 0 : i32
    %c0_i32_1 = arith.constant 0 : i32
    return %c0_i32, %c0_i32_0 : i32, i32
  }
  func.func @transform_5(%arg0: i32) -> (i32, i32) {
    %c0_i32 = arith.constant 0 : i32
    %c0_i32_0 = arith.constant 0 : i32
    %c0_i32_1 = arith.constant 0 : i32
    return %c0_i32, %c0_i32_0 : i32, i32
  }
  func.func @transform_6(%arg0: i32) -> (i32, i32) {
    %c0_i32 = arith.constant 0 : i32
    %c0_i32_0 = arith.constant 0 : i32
    %c0_i32_1 = arith.constant 0 : i32
    return %c0_i32, %c0_i32_0 : i32, i32
  }
  func.func @transform_7(%arg0: i32) -> (i32, i32) {
    %c0_i32 = arith.constant 0 : i32
    %c0_i32_0 = arith.constant 0 : i32
    %c0_i32_1 = arith.constant 0 : i32
    return %c0_i32, %c0_i32_0 : i32, i32
  }
  func.func @transform_8(%arg0: i32) -> (i32, i32) {
    %c0_i32 = arith.constant 0 : i32
    %c0_i32_0 = arith.constant 0 : i32
    %c0_i32_1 = arith.constant 0 : i32
    return %c0_i32, %c0_i32_0 : i32, i32
  }
  func.func @transform_9(%arg0: i32) -> (i32, i32) {
    %c0_i32 = arith.constant 0 : i32
    %c0_i32_0 = arith.constant 0 : i32
    %c0_i32_1 = arith.constant 0 : i32
    return %c0_i32, %c0_i32_0 : i32, i32
  }
  func.func @transform_10(%arg0: i32) -> (i32, i32) {
    %c0_i32 = arith.constant 0 : i32
    %c0_i32_0 = arith.constant 0 : i32
    %c0_i32_1 = arith.constant 0 : i32
    return %c0_i32, %c0_i32_0 : i32, i32
  }
  func.func @transform_11(%arg0: i32) -> (i32, i32) {
    %c0_i32 = arith.constant 0 : i32
    %c0_i32_0 = arith.constant 0 : i32
    %c0_i32_1 = arith.constant 0 : i32
    return %c0_i32, %c0_i32_0 : i32, i32
  }
  func.func @transform_12(%arg0: i32) -> (i32, i32) {
    %c0_i32 = arith.constant 0 : i32
    %c0_i32_0 = arith.constant 0 : i32
    %c0_i32_1 = arith.constant 0 : i32
    return %c0_i32, %c0_i32_0 : i32, i32
  }
  func.func @transform_13(%arg0: i32) -> (i32, i32, i32) {
    %c0_i32 = arith.constant 0 : i32
    %c0_i32_0 = arith.constant 0 : i32
    %c0_i32_1 = arith.constant 0 : i32
    return %arg0, %c0_i32, %c0_i32_0 : i32, i32, i32
  }
}

</mosaic_0001>

<llo_original>
// kernel: tpu_custom_call.1
$region0: #{tpu_custom_call.1}
  #allocation0 [shape = 'u32[]', space=smem, size = 0x4, offset = 0x4, fixed_abs, tag = 'smem constant byte address 0x4 - core index']
  #allocation1 [shape = 'u32[72,128]{1,0:T(1,128)}', space=vmem, size = 0x9000, scoped, tag = 'internal scratch']
  %s0 = inlined_call_operand.vmem [shape: f32[2,16,128], index: 0, kind: input, shape index: {}]
  %s1 = inlined_call_operand.hbm [shape: f32[2,16,128], index: 1, kind: input, shape index: {}]
  %s2 = inlined_call_operand.hbm [shape: f32[128,384], index: 2, kind: input, shape index: {}]
  %s3 = inlined_call_operand.vmem [shape: f32[1,128], index: 3, kind: input, shape index: {}]
  %s4 = inlined_call_operand.hbm [shape: f32[128,384], index: 4, kind: input, shape index: {}]
  %s5 = inlined_call_operand.vmem [shape: f32[1,128], index: 5, kind: input, shape index: {}]
  %s6 = inlined_call_operand.hbm [shape: f32[128,384], index: 6, kind: input, shape index: {}]
  %s7 = inlined_call_operand.vmem [shape: f32[1,128], index: 7, kind: input, shape index: {}]
  %s8 = inlined_call_operand.hbm [shape: f32[128,384], index: 8, kind: input, shape index: {}]
  %s9 = inlined_call_operand.vmem [shape: f32[1,128], index: 9, kind: input, shape index: {}]
  %s10 = inlined_call_operand.vmem [shape: f32[32,16], index: 10, kind: input, shape index: {}]
  %s11 = inlined_call_operand.hbm [shape: f32[128,256], index: 11, kind: input, shape index: {}]
  %s12 = inlined_call_operand.vmem [shape: f32[1,256], index: 12, kind: input, shape index: {}]
  %s13 = inlined_call_operand.hbm [shape: f32[2,32,256], index: 13, kind: output, shape index: {}]
  %s14 = sld [smem:[#allocation0]]
  $region109: #{tpu_custom_call.1} parent=0
    _
  %s16 = ssub.s32 1, %s14
  %s17 = scalar_select 0, %s16, %s14
  $region1: #{tpu_custom_call.1} parent=0
    #allocation2 [shape = 'u8[16384]{0}', space=vmem, size = 0x4000, scoped, tag = 'input window, operand 1']
    #allocation3 [shape = 's32[2]{0}', space=sflag, size = 0x8, scoped, tag = 'scoped memory for tpu_custom_call.1']
    #allocation4 [shape = 's32[2]{0}', space=sflag, size = 0x8, scoped, tag = 'scoped memory for tpu_custom_call.1']
    #allocation5 [shape = 'u8[196608]{0}', space=vmem, size = 0x30000, scoped, tag = 'input window, operand 2, single buffered']
    #allocation6 [shape = 's32[1]{0}', space=sflag, size = 0x4, scoped, tag = 'scoped memory for tpu_custom_call.1']
    #allocation7 [shape = 'u8[196608]{0}', space=vmem, size = 0x30000, scoped, tag = 'input window, operand 4, single buffered']
    #allocation8 [shape = 'u8[196608]{0}', space=vmem, size = 0x30000, scoped, tag = 'input window, operand 6, single buffered']
    #allocation9 [shape = 's32[1]{0}', space=sflag, size = 0x4, scoped, tag = 'scoped memory for tpu_custom_call.1']
    #allocation10 [shape = 'u8[196608]{0}', space=vmem, size = 0x30000, scoped, tag = 'input window, operand 8, single buffered']
    #allocation11 [shape = 'u8[131072]{0}', space=vmem, size = 0x20000, scoped, tag = 'input window, operand 11, single buffered']
    #allocation12 [shape = 's32[1]{0}', space=sflag, size = 0x4, scoped, tag = 'scoped memory for tpu_custom_call.1']
    #allocation13 [shape = 'u8[65536]{0}', space=vmem, size = 0x10000, scoped, tag = 'output window, operand 0']
    %18 = vsyncpa [#allocation3], 0
    %s19 = scalar_lea.sflag [#allocation3], 1
    %20 = vsyncpa %s19, 0
    %21 = vsyncpa [#allocation6], 0
    %22 = vsyncpa [#allocation9], 0
    %23 = vsyncpa [#allocation12], 0
    %24 = vsyncpa [#allocation4], 0
    %s25 = scalar_lea.sflag [#allocation4], 1
    %26 = vsyncpa %s25, 0
    loop: start=0, step=1, limit=4
    $region2: #{tpu_custom_call.1} parent=1 // loop_pre_header
      _
    $region3: #{tpu_custom_call.1} parent=1 // loop_header
      %s28 = sphi 0, %s32
      %p29 = scmp.ge.s32.totalorder %s28, 4
      %s38 = sphi 0, %s40
      %s41 = sphi 0, %s38
      %s42 = sphi 0, %s41
      %s58 = sphi 0, %s42
      %s64 = sphi 0, %s66
      %s67 = sphi 0, %s64
      %s68 = sphi 0, %s67
      %s84 = sphi 0, %s68
      %s88 = sphi 0, %s88
      %s90 = sphi 0, %s88
      %s91 = sphi 0, %s90
      %s105 = sphi 0, %s91
      %s109 = sphi 0, %s109
      %s111 = sphi 0, %s109
      %s112 = sphi 0, %s111
      %s126 = sphi 0, %s112
      %s130 = sphi 0, %s130
      %s132 = sphi 0, %s130
      %s133 = sphi 0, %s132
      %s147 = sphi 0, %s133
      %s151 = sphi 0, %s151
      %s153 = sphi 0, %s151
      %s154 = sphi 0, %s153
      %s168 = sphi 0, %s154
      %s172 = sphi 0, %s172
      %s174 = sphi 0, %s172
      %s175 = sphi 0, %s174
      %s189 = sphi 0, %s175
      %s193 = sphi 0, %s193
      %s195 = sphi 0, %s193
      %s196 = sphi 0, %s195
      %s210 = sphi 0, %s196
      %s214 = sphi 0, %s214
      %s216 = sphi 0, %s214
      %s217 = sphi 0, %s216
      %s231 = sphi 0, %s217
      %s235 = sphi 0, %s235
      %s237 = sphi 0, %s235
      %s238 = sphi 0, %s237
      %s252 = sphi 0, %s238
      %s256 = sphi 0, %s256
      %s258 = sphi 0, %s256
      %s259 = sphi 0, %s258
      %s273 = sphi 0, %s259
      %s277 = sphi 0, %s277
      %s279 = sphi 0, %s277
      %s280 = sphi 0, %s279
      %s294 = sphi 0, %s280
      %s298 = sphi 0, %s298
      %s300 = sphi 0, %s298
      %s301 = sphi 0, %s300
      %s315 = sphi 0, %s301
      %s321 = sphi 0, %s323
      %s324 = sphi 0, %s321
      %s325 = sphi 0, %s324
      %s341 = sphi 0, %s325
    $region4: #{tpu_custom_call.1} parent=1 // loop_header_branch
      %31 = sbr.rel (%p29) target = $region8
    $region5: #{tpu_custom_call.1} parent=1 // loop_body
      %s33 = ssub.s32 %s28, 1
      %s34 = ssub.s32 %s28, 2
      %s35 = sadd.s32 %s28, 1
      %s36 = ssub.s32 %s28, %s35
      %p37 = scmp.eq.s32.totalorder %s36, 0
      %s39 = sadd.s32 %s38, 1
      %s40 = scalar_select %p37, %s38, %s39
      %p43 = pneg %p37
      %p44 = scmp.eq.s32.totalorder %s28, 1
      %p45 = por %p43, %p44
      %p46 = scmp.ne.s32.totalorder %s38, %s41
      %p47 = scmp.eq.s32.totalorder %s28, 0
      %p48 = por %p46, %p47
      %p49 = scmp.ne.s32.totalorder %s38, %s41
      %p50 = scmp.eq.s32.totalorder %s33, 1
      %p51 = por %p49, %p50
      %p52 = scmp.ne.s32.totalorder %s41, %s42
      %p53 = scmp.eq.s32.totalorder %s33, 0
      %p54 = por %p52, %p53
      %p55 = scmp.ne.s32.totalorder %s41, %s42
      %p56 = scmp.eq.s32.totalorder %s34, 1
      %p57 = por %p55, %p56
      %p59 = scmp.ne.s32.totalorder %s42, %s58
      %p60 = scmp.eq.s32.totalorder %s34, 0
      %p61 = por %p59, %p60
      %s62 = ssub.s32 %s28, %s35
      %p63 = scmp.eq.s32.totalorder %s62, 0
      %s65 = sadd.s32 %s64, 1
      %s66 = scalar_select %p63, %s64, %s65
      %p69 = pneg %p63
      %p70 = scmp.eq.s32.totalorder %s28, 1
      %p71 = por %p69, %p70
      %p72 = scmp.ne.s32.totalorder %s64, %s67
      %p73 = scmp.eq.s32.totalorder %s28, 0
      %p74 = por %p72, %p73
      %p75 = scmp.ne.s32.totalorder %s64, %s67
      %p76 = scmp.eq.s32.totalorder %s33, 1
      %p77 = por %p75, %p76
      %p78 = scmp.ne.s32.totalorder %s67, %s68
      %p79 = scmp.eq.s32.totalorder %s33, 0
      %p80 = por %p78, %p79
      %p81 = scmp.ne.s32.totalorder %s67, %s68
      %p82 = scmp.eq.s32.totalorder %s34, 1
      %p83 = por %p81, %p82
      %p85 = scmp.ne.s32.totalorder %s68, %s84
      %p86 = scmp.eq.s32.totalorder %s34, 0
      %p87 = por %p85, %p86
      %s89 = sadd.s32 %s88, 1
      %p92 = scmp.eq.s32.totalorder %s28, 1
      %p93 = scmp.ne.s32.totalorder %s88, %s90
      %p94 = scmp.eq.s32.totalorder %s28, 0
      %p95 = por %p93, %p94
      %p96 = scmp.ne.s32.totalorder %s88, %s90
      %p97 = scmp.eq.s32.totalorder %s33, 1
      %p98 = por %p96, %p97
      %p99 = scmp.ne.s32.totalorder %s90, %s91
      %p100 = scmp.eq.s32.totalorder %s33, 0
      %p101 = por %p99, %p100
      %p102 = scmp.ne.s32.totalorder %s90, %s91
      %p103 = scmp.eq.s32.totalorder %s34, 1
      %p104 = por %p102, %p103
      %p106 = scmp.ne.s32.totalorder %s91, %s105
      %p107 = scmp.eq.s32.totalorder %s34, 0
      %p108 = por %p106, %p107
      %s110 = sadd.s32 %s109, 1
      %p113 = scmp.eq.s32.totalorder %s28, 1
      %p114 = scmp.ne.s32.totalorder %s109, %s111
      %p115 = scmp.eq.s32.totalorder %s28, 0
      %p116 = por %p114, %p115
      %p117 = scmp.ne.s32.totalorder %s109, %s111
      %p118 = scmp.eq.s32.totalorder %s33, 1
      %p119 = por %p117, %p118
      %p120 = scmp.ne.s32.totalorder %s111, %s112
      %p121 = scmp.eq.s32.totalorder %s33, 0
      %p122 = por %p120, %p121
      %p123 = scmp.ne.s32.totalorder %s111, %s112
      %p124 = scmp.eq.s32.totalorder %s34, 1
      %p125 = por %p123, %p124
      %p127 = scmp.ne.s32.totalorder %s112, %s126
      %p128 = scmp.eq.s32.totalorder %s34, 0
      %p129 = por %p127, %p128
      %s131 = sadd.s32 %s130, 1
      %p134 = scmp.eq.s32.totalorder %s28, 1
      %p135 = scmp.ne.s32.totalorder %s130, %s132
      %p136 = scmp.eq.s32.totalorder %s28, 0
      %p137 = por %p135, %p136
      %p138 = scmp.ne.s32.totalorder %s130, %s132
      %p139 = scmp.eq.s32.totalorder %s33, 1
      %p140 = por %p138, %p139
      %p141 = scmp.ne.s32.totalorder %s132, %s133
      %p142 = scmp.eq.s32.totalorder %s33, 0
      %p143 = por %p141, %p142
      %p144 = scmp.ne.s32.totalorder %s132, %s133
      %p145 = scmp.eq.s32.totalorder %s34, 1
      %p146 = por %p144, %p145
      %p148 = scmp.ne.s32.totalorder %s133, %s147
      %p149 = scmp.eq.s32.totalorder %s34, 0
      %p150 = por %p148, %p149
      %s152 = sadd.s32 %s151, 1
      %p155 = scmp.eq.s32.totalorder %s28, 1
      %p156 = scmp.ne.s32.totalorder %s151, %s153
      %p157 = scmp.eq.s32.totalorder %s28, 0
      %p158 = por %p156, %p157
      %p159 = scmp.ne.s32.totalorder %s151, %s153
      %p160 = scmp.eq.s32.totalorder %s33, 1
      %p161 = por %p159, %p160
      %p162 = scmp.ne.s32.totalorder %s153, %s154
      %p163 = scmp.eq.s32.totalorder %s33, 0
      %p164 = por %p162, %p163
      %p165 = scmp.ne.s32.totalorder %s153, %s154
      %p166 = scmp.eq.s32.totalorder %s34, 1
      %p167 = por %p165, %p166
      %p169 = scmp.ne.s32.totalorder %s154, %s168
      %p170 = scmp.eq.s32.totalorder %s34, 0
      %p171 = por %p169, %p170
      %s173 = sadd.s32 %s172, 1
      %p176 = scmp.eq.s32.totalorder %s28, 1
      %p177 = scmp.ne.s32.totalorder %s172, %s174
      %p178 = scmp.eq.s32.totalorder %s28, 0
      %p179 = por %p177, %p178
      %p180 = scmp.ne.s32.totalorder %s172, %s174
      %p181 = scmp.eq.s32.totalorder %s33, 1
      %p182 = por %p180, %p181
      %p183 = scmp.ne.s32.totalorder %s174, %s175
      %p184 = scmp.eq.s32.totalorder %s33, 0
      %p185 = por %p183, %p184
      %p186 = scmp.ne.s32.totalorder %s174, %s175
      %p187 = scmp.eq.s32.totalorder %s34, 1
      %p188 = por %p186, %p187
      %p190 = scmp.ne.s32.totalorder %s175, %s189
      %p191 = scmp.eq.s32.totalorder %s34, 0
      %p192 = por %p190, %p191
      %s194 = sadd.s32 %s193, 1
      %p197 = scmp.eq.s32.totalorder %s28, 1
      %p198 = scmp.ne.s32.totalorder %s193, %s195
      %p199 = scmp.eq.s32.totalorder %s28, 0
      %p200 = por %p198, %p199
      %p201 = scmp.ne.s32.totalorder %s193, %s195
      %p202 = scmp.eq.s32.totalorder %s33, 1
      %p203 = por %p201, %p202
      %p204 = scmp.ne.s32.totalorder %s195, %s196
      %p205 = scmp.eq.s32.totalorder %s33, 0
      %p206 = por %p204, %p205
      %p207 = scmp.ne.s32.totalorder %s195, %s196
      %p208 = scmp.eq.s32.totalorder %s34, 1
      %p209 = por %p207, %p208
      %p211 = scmp.ne.s32.totalorder %s196, %s210
      %p212 = scmp.eq.s32.totalorder %s34, 0
      %p213 = por %p211, %p212
      %s215 = sadd.s32 %s214, 1
      %p218 = scmp.eq.s32.totalorder %s28, 1
      %p219 = scmp.ne.s32.totalorder %s214, %s216
      %p220 = scmp.eq.s32.totalorder %s28, 0
      %p221 = por %p219, %p220
      %p222 = scmp.ne.s32.totalorder %s214, %s216
      %p223 = scmp.eq.s32.totalorder %s33, 1
      %p224 = por %p222, %p223
      %p225 = scmp.ne.s32.totalorder %s216, %s217
      %p226 = scmp.eq.s32.totalorder %s33, 0
      %p227 = por %p225, %p226
      %p228 = scmp.ne.s32.totalorder %s216, %s217
      %p229 = scmp.eq.s32.totalorder %s34, 1
      %p230 = por %p228, %p229
      %p232 = scmp.ne.s32.totalorder %s217, %s231
      %p233 = scmp.eq.s32.totalorder %s34, 0
      %p234 = por %p232, %p233
      %s236 = sadd.s32 %s235, 1
      %p239 = scmp.eq.s32.totalorder %s28, 1
      %p240 = scmp.ne.s32.totalorder %s235, %s237
      %p241 = scmp.eq.s32.totalorder %s28, 0
      %p242 = por %p240, %p241
      %p243 = scmp.ne.s32.totalorder %s235, %s237
      %p244 = scmp.eq.s32.totalorder %s33, 1
      %p245 = por %p243, %p244
      %p246 = scmp.ne.s32.totalorder %s237, %s238
      %p247 = scmp.eq.s32.totalorder %s33, 0
      %p248 = por %p246, %p247
      %p249 = scmp.ne.s32.totalorder %s237, %s238
      %p250 = scmp.eq.s32.totalorder %s34, 1
      %p251 = por %p249, %p250
      %p253 = scmp.ne.s32.totalorder %s238, %s252
      %p254 = scmp.eq.s32.totalorder %s34, 0
      %p255 = por %p253, %p254
      %s257 = sadd.s32 %s256, 1
      %p260 = scmp.eq.s32.totalorder %s28, 1
      %p261 = scmp.ne.s32.totalorder %s256, %s258
      %p262 = scmp.eq.s32.totalorder %s28, 0
      %p263 = por %p261, %p262
      %p264 = scmp.ne.s32.totalorder %s256, %s258
      %p265 = scmp.eq.s32.totalorder %s33, 1
      %p266 = por %p264, %p265
      %p267 = scmp.ne.s32.totalorder %s258, %s259
      %p268 = scmp.eq.s32.totalorder %s33, 0
      %p269 = por %p267, %p268
      %p270 = scmp.ne.s32.totalorder %s258, %s259
      %p271 = scmp.eq.s32.totalorder %s34, 1
      %p272 = por %p270, %p271
      %p274 = scmp.ne.s32.totalorder %s259, %s273
      %p275 = scmp.eq.s32.totalorder %s34, 0
      %p276 = por %p274, %p275
      %s278 = sadd.s32 %s277, 1
      %p281 = scmp.eq.s32.totalorder %s28, 1
      %p282 = scmp.ne.s32.totalorder %s277, %s279
      %p283 = scmp.eq.s32.totalorder %s28, 0
      %p284 = por %p282, %p283
      %p285 = scmp.ne.s32.totalorder %s277, %s279
      %p286 = scmp.eq.s32.totalorder %s33, 1
      %p287 = por %p285, %p286
      %p288 = scmp.ne.s32.totalorder %s279, %s280
      %p289 = scmp.eq.s32.totalorder %s33, 0
      %p290 = por %p288, %p289
      %p291 = scmp.ne.s32.totalorder %s279, %s280
      %p292 = scmp.eq.s32.totalorder %s34, 1
      %p293 = por %p291, %p292
      %p295 = scmp.ne.s32.totalorder %s280, %s294
      %p296 = scmp.eq.s32.totalorder %s34, 0
      %p297 = por %p295, %p296
      %s299 = sadd.s32 %s298, 1
      %p302 = scmp.eq.s32.totalorder %s28, 1
      %p303 = scmp.ne.s32.totalorder %s298, %s300
      %p304 = scmp.eq.s32.totalorder %s28, 0
      %p305 = por %p303, %p304
      %p306 = scmp.ne.s32.totalorder %s298, %s300
      %p307 = scmp.eq.s32.totalorder %s33, 1
      %p308 = por %p306, %p307
      %p309 = scmp.ne.s32.totalorder %s300, %s301
      %p310 = scmp.eq.s32.totalorder %s33, 0
      %p311 = por %p309, %p310
      %p312 = scmp.ne.s32.totalorder %s300, %s301
      %p313 = scmp.eq.s32.totalorder %s34, 1
      %p314 = por %p312, %p313
      %p316 = scmp.ne.s32.totalorder %s301, %s315
      %p317 = scmp.eq.s32.totalorder %s34, 0
      %p318 = por %p316, %p317
      %s319 = ssub.s32 %s28, %s35
      %p320 = scmp.eq.s32.totalorder %s319, 0
      %s322 = sadd.s32 %s321, 1
      %s323 = scalar_select %p320, %s321, %s322
      %p326 = pneg %p320
      %p327 = scmp.eq.s32.totalorder %s28, 1
      %p328 = por %p326, %p327
      %p329 = scmp.ne.s32.totalorder %s321, %s324
      %p330 = scmp.eq.s32.totalorder %s28, 0
      %p331 = por %p329, %p330
      %p332 = scmp.ne.s32.totalorder %s321, %s324
      %p333 = scmp.eq.s32.totalorder %s33, 1
      %p334 = por %p332, %p333
      %p335 = scmp.ne.s32.totalorder %s324, %s325
      %p336 = scmp.eq.s32.totalorder %s33, 0
      %p337 = por %p335, %p336
      %p338 = scmp.ne.s32.totalorder %s324, %s325
      %p339 = scmp.eq.s32.totalorder %s34, 1
      %p340 = por %p338, %p339
      %p342 = scmp.ne.s32.totalorder %s325, %s341
      %p343 = scmp.eq.s32.totalorder %s34, 0
      %p344 = por %p342, %p343
      %p345 = scmp.le.s32.totalorder 1, %s28
      %p346 = scmp.lt.s32.totalorder %s28, 3
      %p347 = pnand %p345, %p346
      %p348 = pneg %p347
      // Predicated region
      $region9: #{tpu_custom_call.1} parent=5 // pred_check
        _
      $region10: #{tpu_custom_call.1} parent=5 // pred_check_branch
        %350 = sbr.rel (%p347) target = $region12
      $region11: #{tpu_custom_call.1} parent=5 // pred_region
        %s351 = ssub.s32 %s28, 1
        // Predicated region
        $region13: #{tpu_custom_call.1} parent=11 // pred_check
          %p352 = pneg %p101
        $region14: #{tpu_custom_call.1} parent=11 // pred_check_branch
          %354 = sbr.rel (%p352) target = $region16
        $region15: #{tpu_custom_call.1} parent=11 // pred_region
          %356 = vsyncadd [#allocation6], 0
          %s357 = sshll.u32 %s2, 4
          %s358 = int_to_ptr.hbm [resolvable:$true] %s357
          %s359 = sshll.u32 [#allocation5], 4
          %s360 = int_to_ptr.vmem [resolvable:$true] %s359
          %365 = dma.hbm_to_vmem [thread:$0]  %s358, 6144, %s360, [#allocation6], 384, 384, 24
        $region16: #{tpu_custom_call.1} parent=11 // pred_fallthru
          _
        // Predicated region
        $region17: #{tpu_custom_call.1} parent=11 // pred_check
          %p366 = pneg %p122
        $region18: #{tpu_custom_call.1} parent=11 // pred_check_branch
          %368 = sbr.rel (%p366) target = $region20
        $region19: #{tpu_custom_call.1} parent=11 // pred_region
          _
        $region20: #{tpu_custom_call.1} parent=11 // pred_fallthru
          _
        // Predicated region
        $region21: #{tpu_custom_call.1} parent=11 // pred_check
          %p369 = pneg %p143
        $region22: #{tpu_custom_call.1} parent=11 // pred_check_branch
          %371 = sbr.rel (%p369) target = $region24
        $region23: #{tpu_custom_call.1} parent=11 // pred_region
          %373 = vsyncadd [#allocation6], 0
          %s374 = sshll.u32 %s4, 4
          %s375 = int_to_ptr.hbm [resolvable:$true] %s374
          %s376 = sshll.u32 [#allocation7], 4
          %s377 = int_to_ptr.vmem [resolvable:$true] %s376
          %382 = dma.hbm_to_vmem [thread:$0]  %s375, 6144, %s377, [#allocation6], 384, 384, 24
        $region24: #{tpu_custom_call.1} parent=11 // pred_fallthru
          _
        // Predicated region
        $region25: #{tpu_custom_call.1} parent=11 // pred_check
          %p383 = pneg %p164
        $region26: #{tpu_custom_call.1} parent=11 // pred_check_branch
          %385 = sbr.rel (%p383) target = $region28
        $region27: #{tpu_custom_call.1} parent=11 // pred_region
          _
        $region28: #{tpu_custom_call.1} parent=11 // pred_fallthru
          _
        // Predicated region
        $region29: #{tpu_custom_call.1} parent=11 // pred_check
          %p386 = pneg %p185
        $region30: #{tpu_custom_call.1} parent=11 // pred_check_branch
          %388 = sbr.rel (%p386) target = $region32
        $region31: #{tpu_custom_call.1} parent=11 // pred_region
          %390 = vsyncadd [#allocation9], 0
          %s391 = sshll.u32 %s6, 4
          %s392 = int_to_ptr.hbm [resolvable:$true] %s391
          %s393 = sshll.u32 [#allocation8], 4
          %s394 = int_to_ptr.vmem [resolvable:$true] %s393
          %399 = dma.hbm_to_vmem [thread:$0]  %s392, 6144, %s394, [#allocation9], 384, 384, 24
        $region32: #{tpu_custom_call.1} parent=11 // pred_fallthru
          _
        // Predicated region
        $region33: #{tpu_custom_call.1} parent=11 // pred_check
          %p400 = pneg %p206
        $region34: #{tpu_custom_call.1} parent=11 // pred_check_branch
          %402 = sbr.rel (%p400) target = $region36
        $region35: #{tpu_custom_call.1} parent=11 // pred_region
          _
        $region36: #{tpu_custom_call.1} parent=11 // pred_fallthru
          _
        // Predicated region
        $region37: #{tpu_custom_call.1} parent=11 // pred_check
          %p403 = pneg %p227
        $region38: #{tpu_custom_call.1} parent=11 // pred_check_branch
          %405 = sbr.rel (%p403) target = $region40
        $region39: #{tpu_custom_call.1} parent=11 // pred_region
          %407 = vsyncadd [#allocation9], 0
          %s408 = sshll.u32 %s8, 4
          %s409 = int_to_ptr.hbm [resolvable:$true] %s408
          %s410 = sshll.u32 [#allocation10], 4
          %s411 = int_to_ptr.vmem [resolvable:$true] %s410
          %416 = dma.hbm_to_vmem [thread:$0]  %s409, 6144, %s411, [#allocation9], 384, 384, 24
        $region40: #{tpu_custom_call.1} parent=11 // pred_fallthru
          _
        // Predicated region
        $region41: #{tpu_custom_call.1} parent=11 // pred_check
          %p417 = pneg %p248
        $region42: #{tpu_custom_call.1} parent=11 // pred_check_branch
          %419 = sbr.rel (%p417) target = $region44
        $region43: #{tpu_custom_call.1} parent=11 // pred_region
          _
        $region44: #{tpu_custom_call.1} parent=11 // pred_fallthru
          _
        // Predicated region
        $region45: #{tpu_custom_call.1} parent=11 // pred_check
          %p420 = pneg %p269
        $region46: #{tpu_custom_call.1} parent=11 // pred_check_branch
          %422 = sbr.rel (%p420) target = $region48
        $region47: #{tpu_custom_call.1} parent=11 // pred_region
          _
        $region48: #{tpu_custom_call.1} parent=11 // pred_fallthru
          _
        // Predicated region
        $region49: #{tpu_custom_call.1} parent=11 // pred_check
          %p423 = pneg %p290
        $region50: #{tpu_custom_call.1} parent=11 // pred_check_branch
          %425 = sbr.rel (%p423) target = $region52
        $region51: #{tpu_custom_call.1} parent=11 // pred_region
          %427 = vsyncadd [#allocation12], 0
          %s428 = sshll.u32 %s11, 4
          %s429 = int_to_ptr.hbm [resolvable:$true] %s428
          %s430 = sshll.u32 [#allocation11], 4
          %s431 = int_to_ptr.vmem [resolvable:$true] %s430
          %436 = dma.hbm_to_vmem [thread:$0]  %s429, 4096, %s431, [#allocation12], 256, 256, 16
        $region52: #{tpu_custom_call.1} parent=11 // pred_fallthru
          _
        // Predicated region
        $region53: #{tpu_custom_call.1} parent=11 // pred_check
          %p437 = pneg %p311
        $region54: #{tpu_custom_call.1} parent=11 // pred_check_branch
          %439 = sbr.rel (%p437) target = $region56
        $region55: #{tpu_custom_call.1} parent=11 // pred_region
          _
        $region56: #{tpu_custom_call.1} parent=11 // pred_fallthru
          _
      $region12: #{tpu_custom_call.1} parent=5 // pred_fallthru
        _
      %p440 = scmp.lt.s32.totalorder %s28, 2
      // Predicated region
      $region57: #{tpu_custom_call.1} parent=5 // pred_check
        %p441 = pneg %p440
      $region58: #{tpu_custom_call.1} parent=5 // pred_check_branch
        %443 = sbr.rel (%p441) target = $region60
      $region59: #{tpu_custom_call.1} parent=5 // pred_region
        // Predicated region
        $region61: #{tpu_custom_call.1} parent=59 // pred_check
          %p444 = pneg %p48
        $region62: #{tpu_custom_call.1} parent=59 // pred_check_branch
          %446 = sbr.rel (%p444) target = $region64
        $region63: #{tpu_custom_call.1} parent=59 // pred_region
          %p447 = scmp.lt.s32.totalorder %s28, 1
          %s448 = scalar_select %p447, %s28, 1
          %s449 = smul.addr %s448, 2
          %s450 = smul.addr %s449, 8
          %s451 = scalar_lea.vmem %s0, %s450
        $region64: #{tpu_custom_call.1} parent=59 // pred_fallthru
          _
        // Predicated region
        $region65: #{tpu_custom_call.1} parent=59 // pred_check
          %p452 = pneg %p74
        $region66: #{tpu_custom_call.1} parent=59 // pred_check_branch
          %454 = sbr.rel (%p452) target = $region68
        $region67: #{tpu_custom_call.1} parent=59 // pred_region
          %s455 = sand.u32 %s64, 1
          %s456 = scalar_lea.sflag [#allocation3], %s455
          %s457 = sand.u32 %s64, 1
          %s458 = smul.addr %s457, 16
          %s459 = scalar_lea.vmem [#allocation2], %s458
          %461 = vsyncadd %s456, 0
          %s462 = smul.addr %s28, 2
          %s463 = smul.addr %s462, 8
          %s464 = scalar_lea.hbm %s1, %s463
          %s465 = sshll.u32 %s464, 4
          %s466 = int_to_ptr.hbm [resolvable:$true] %s465
          %s467 = sshll.u32 %s459, 4
          %s468 = int_to_ptr.vmem [resolvable:$true] %s467
          %473 = dma.hbm_to_vmem [thread:$0]  %s466, 256, %s468, %s456, 128, 128, 8
        $region68: #{tpu_custom_call.1} parent=59 // pred_fallthru
          _
      $region60: #{tpu_custom_call.1} parent=5 // pred_fallthru
        _
      %p474 = scmp.le.s32.totalorder 1, %s28
      %p475 = scmp.lt.s32.totalorder %s28, 3
      %p476 = pnand %p474, %p475
      %p477 = pneg %p476
      // Predicated region
      $region69: #{tpu_custom_call.1} parent=5 // pred_check
        _
      $region70: #{tpu_custom_call.1} parent=5 // pred_check_branch
        %479 = sbr.rel (%p476) target = $region72
      $region71: #{tpu_custom_call.1} parent=5 // pred_region
        %s480 = ssub.s32 %s28, 1
        %s481 = sand.u32 %s67, 1
        %s482 = scalar_lea.sflag [#allocation3], %s481
        %s483 = sand.u32 %s67, 1
        %s484 = smul.addr %s483, 16
        %s485 = scalar_lea.vmem [#allocation2], %s484
        // Predicated region
        $region73: #{tpu_custom_call.1} parent=71 // pred_check
          %p486 = pneg %p80
        $region74: #{tpu_custom_call.1} parent=71 // pred_check_branch
          %488 = sbr.rel (%p486) target = $region76
        $region75: #{tpu_custom_call.1} parent=71 // pred_region
          %490 = dma.done %s482, 256
        $region76: #{tpu_custom_call.1} parent=71 // pred_fallthru
          _
        // Predicated region
        $region77: #{tpu_custom_call.1} parent=71 // pred_check
          %p491 = pneg %p101
        $region78: #{tpu_custom_call.1} parent=71 // pred_check_branch
          %493 = sbr.rel (%p491) target = $region80
        $region79: #{tpu_custom_call.1} parent=71 // pred_region
          %495 = dma.done [#allocation6], 6144
        $region80: #{tpu_custom_call.1} parent=71 // pred_fallthru
          _
        // Predicated region
        $region81: #{tpu_custom_call.1} parent=71 // pred_check
          %p496 = pneg %p143
        $region82: #{tpu_custom_call.1} parent=71 // pred_check_branch
          %498 = sbr.rel (%p496) target = $region84
        $region83: #{tpu_custom_call.1} parent=71 // pred_region
          %500 = dma.done [#allocation6], 6144
        $region84: #{tpu_custom_call.1} parent=71 // pred_fallthru
          _
        // Predicated region
        $region85: #{tpu_custom_call.1} parent=71 // pred_check
          %p501 = pneg %p185
        $region86: #{tpu_custom_call.1} parent=71 // pred_check_branch
          %503 = sbr.rel (%p501) target = $region88
        $region87: #{tpu_custom_call.1} parent=71 // pred_region
          %505 = dma.done [#allocation9], 6144
        $region88: #{tpu_custom_call.1} parent=71 // pred_fallthru
          _
        // Predicated region
        $region89: #{tpu_custom_call.1} parent=71 // pred_check
          %p506 = pneg %p227
        $region90: #{tpu_custom_call.1} parent=71 // pred_check_branch
          %508 = sbr.rel (%p506) target = $region92
        $region91: #{tpu_custom_call.1} parent=71 // pred_region
          %510 = dma.done [#allocation9], 6144
        $region92: #{tpu_custom_call.1} parent=71 // pred_fallthru
          _
        // Predicated region
        $region93: #{tpu_custom_call.1} parent=71 // pred_check
          %p511 = pneg %p290
        $region94: #{tpu_custom_call.1} parent=71 // pred_check_branch
          %513 = sbr.rel (%p511) target = $region96
        $region95: #{tpu_custom_call.1} parent=71 // pred_region
          %515 = dma.done [#allocation12], 4096
        $region96: #{tpu_custom_call.1} parent=71 // pred_fallthru
          _
        %p516 = scmp.lt.s32.totalorder %s33, 1
        %s517 = scalar_select %p516, %s33, 1
        %s518 = smul.addr %s517, 2
        %s519 = smul.addr %s518, 8
        %s520 = scalar_lea.vmem %s0, %s519
        %p521 = pneg %p54
        %p522 = pneg %p51
        %s523 = sand.u32 %s67, 1
        %s524 = scalar_lea.sflag [#allocation3], %s523
        %s525 = sand.u32 %s67, 1
        %s526 = smul.addr %s525, 16
        %s527 = scalar_lea.vmem [#allocation2], %s526
        %p528 = pneg %p80
        %p529 = pneg %p77
        %p530 = pneg %p101
        %p531 = pneg %p98
        %p532 = pneg %p122
        %p533 = pneg %p119
        %p534 = pneg %p143
        %p535 = pneg %p140
        %p536 = pneg %p164
        %p537 = pneg %p161
        %p538 = pneg %p185
        %p539 = pneg %p182
        %p540 = pneg %p206
        %p541 = pneg %p203
        %p542 = pneg %p227
        %p543 = pneg %p224
        %p544 = pneg %p248
        %p545 = pneg %p245
        %p546 = pneg %p269
        %p547 = pneg %p266
        %p548 = pneg %p290
        %p549 = pneg %p287
        %p550 = pneg %p311
        %p551 = pneg %p308
        %p552 = pneg %p337
        %p553 = pneg %p334
        %s554 = sand.u32 %s324, 1
        %s555 = scalar_lea.sflag [#allocation4], %s554
        %s556 = sand.u32 %s324, 1
        %s557 = smul.addr %s556, 64
        %s558 = scalar_lea.vmem [#allocation13], %s557
        %p559 = scmp.lt.s32.totalorder %s33, 1
        %s560 = scalar_select %p559, %s33, 1
        %s561 = smul.addr %s560, 2
        %s562 = smul.addr %s561, 8
        %s563 = scalar_lea.vmem %s0, %s562
        %v564 = vlaneseq
        %v565 = vshrl.u32 %v564, 7
        %v566 = vadd.s32 %v565, 8
        %v567 = vlaneseq
        %v568 = vand.u32 %v567, 127
        %v569 = vadd.s32 %v568, 1
        %vm570 = vcmp.eq.s32.totalorder %v565, %v569
        %vm571 = vcmp.eq.s32.totalorder %v566, %v569
        %v572 = vsel %vm570, 1.0, 0.0
        %v573 = vsel %vm571, 1.0, 0.0
        %v574 = vadd.s32 %v565, 1
        %v575 = vadd.s32 %v566, 1
        %vm576 = vcmp.eq.s32.totalorder %v568, %v574
        %vm577 = vcmp.eq.s32.totalorder %v568, %v575
        %v578 = vsel %vm576, 1.0, 0.0
        %v579 = vsel %vm577, 1.0, 0.0
        %v580 = vld [vmem:[%s563] sm:$0xff]
        %v581 = vld [vmem:[%s563 + $0x8] sm:$0xff]
        %v582 = vld [vmem:[%s485] sm:$0xff]
        %v583 = vld [vmem:[%s485 + $0x8] sm:$0xff]
        %v584 = vmax.f32 %v582, 0.0
        %v585 = vmax.f32 %v583, 0.0
        %v586 = vld [vmem:[#allocation5] sm:$0xff]
        %v587 = vld [vmem:[#allocation5 + $0x8] sm:$0xff]
        %v588 = vld [vmem:[#allocation5 + $0x10] sm:$0xff]
        %v589 = vld [vmem:[#allocation5 + $0x18] sm:$0xff]
        %v590 = vld [vmem:[#allocation5 + $0x20] sm:$0xff]
        %v591 = vld [vmem:[#allocation5 + $0x28] sm:$0xff]
        %v592 = vld [vmem:[#allocation5 + $0x30] sm:$0xff]
        %v593 = vld [vmem:[#allocation5 + $0x38] sm:$0xff]
        %v594 = vld [vmem:[#allocation5 + $0x40] sm:$0xff]
        %v595 = vld [vmem:[#allocation5 + $0x48] sm:$0xff]
        %v596 = vld [vmem:[#allocation5 + $0x50] sm:$0xff]
        %v597 = vld [vmem:[#allocation5 + $0x58] sm:$0xff]
        %v598 = vld [vmem:[#allocation5 + $0x60] sm:$0xff]
        %v599 = vld [vmem:[#allocation5 + $0x68] sm:$0xff]
        %v600 = vld [vmem:[#allocation5 + $0x70] sm:$0xff]
        %v601 = vld [vmem:[#allocation5 + $0x78] sm:$0xff]
        %v602 = vld [vmem:[#allocation5 + $0x80] sm:$0xff]
        %v603 = vld [vmem:[#allocation5 + $0x88] sm:$0xff]
        %v604 = vld [vmem:[#allocation5 + $0x90] sm:$0xff]
        %v605 = vld [vmem:[#allocation5 + $0x98] sm:$0xff]
        %v606 = vld [vmem:[#allocation5 + $0xa0] sm:$0xff]
        %v607 = vld [vmem:[#allocation5 + $0xa8] sm:$0xff]
        %v608 = vld [vmem:[#allocation5 + $0xb0] sm:$0xff]
        %v609 = vld [vmem:[#allocation5 + $0xb8] sm:$0xff]
        %v610 = vld [vmem:[#allocation5 + $0xc0] sm:$0xff]
        %v611 = vld [vmem:[#allocation5 + $0xc8] sm:$0xff]
        %v612 = vld [vmem:[#allocation5 + $0xd0] sm:$0xff]
        %v613 = vld [vmem:[#allocation5 + $0xd8] sm:$0xff]
        %v614 = vld [vmem:[#allocation5 + $0xe0] sm:$0xff]
        %v615 = vld [vmem:[#allocation5 + $0xe8] sm:$0xff]
        %v616 = vld [vmem:[#allocation5 + $0xf0] sm:$0xff]
        %v617 = vld [vmem:[#allocation5 + $0xf8] sm:$0xff]
        %v618 = vld [vmem:[#allocation5 + $0x100] sm:$0xff]
        %v619 = vld [vmem:[#allocation5 + $0x108] sm:$0xff]
        %v620 = vld [vmem:[#allocation5 + $0x110] sm:$0xff]
        %v621 = vld [vmem:[#allocation5 + $0x118] sm:$0xff]
        %v622 = vld [vmem:[#allocation5 + $0x120] sm:$0xff]
        %v623 = vld [vmem:[#allocation5 + $0x128] sm:$0xff]
        %v624 = vld [vmem:[#allocation5 + $0x130] sm:$0xff]
        %v625 = vld [vmem:[#allocation5 + $0x138] sm:$0xff]
        %v626 = vld [vmem:[#allocation5 + $0x140] sm:$0xff]
        %v627 = vld [vmem:[#allocation5 + $0x148] sm:$0xff]
        %v628 = vld [vmem:[#allocation5 + $0x150] sm:$0xff]
        %v629 = vld [vmem:[#allocation5 + $0x158] sm:$0xff]
        %v630 = vld [vmem:[#allocation5 + $0x160] sm:$0xff]
        %v631 = vld [vmem:[#allocation5 + $0x168] sm:$0xff]
        %v632 = vld [vmem:[#allocation5 + $0x170] sm:$0xff]
        %v633 = vld [vmem:[#allocation5 + $0x178] sm:$0xff]
        %634 = vmatpush.msra.mxu0 %v631
        %635 = vmatpush.msra.mxu0 %v628
        %636 = vmatpush.msra.mxu0 %v625
        %637 = vmatpush.msra.mxu0 %v622
        %638 = vmatpush.msra.mxu0 %v619
        %639 = vmatpush.msra.mxu0 %v616
        %640 = vmatpush.msra.mxu0 %v613
        %641 = vmatpush.msra.mxu0 %v610
        %642 = vmatpush.msra.mxu0 %v607
        %643 = vmatpush.msra.mxu0 %v604
        %644 = vmatpush.msra.mxu0 %v601
        %645 = vmatpush.msra.mxu0 %v598
        %646 = vmatpush.msra.mxu0 %v595
        %647 = vmatpush.msra.mxu0 %v592
        %648 = vmatpush.msra.mxu0 %v589
        %649 = vmatpush.msra.mxu0 %v586
        %650 = vmatmul.f32.gmra.mxu0 %v584
        %v651 = vpop.f32.mrf.mxu0
        %v652 = vadd.f32 0.0, %v651
        %653 = vmatmul.f32.gmra.mxu0 %v585
        %v654 = vpop.f32.mrf.mxu0
        %v655 = vadd.f32 0.0, %v654
        %656 = vdwg.mxu0
        %657 = vmatpush.msra.mxu0 %v632
        %658 = vmatpush.msra.mxu0 %v629
        %659 = vmatpush.msra.mxu0 %v626
        %660 = vmatpush.msra.mxu0 %v623
        %661 = vmatpush.msra.mxu0 %v620
        %662 = vmatpush.msra.mxu0 %v617
        %663 = vmatpush.msra.mxu0 %v614
        %664 = vmatpush.msra.mxu0 %v611
        %665 = vmatpush.msra.mxu0 %v608
        %666 = vmatpush.msra.mxu0 %v605
        %667 = vmatpush.msra.mxu0 %v602
        %668 = vmatpush.msra.mxu0 %v599
        %669 = vmatpush.msra.mxu0 %v596
        %670 = vmatpush.msra.mxu0 %v593
        %671 = vmatpush.msra.mxu0 %v590
        %672 = vmatpush.msra.mxu0 %v587
        %673 = vmatmul.f32.gmra.mxu0 %v584
        %v674 = vpop.f32.mrf.mxu0
        %v675 = vadd.f32 0.0, %v674
        %676 = vmatmul.f32.gmra.mxu0 %v585
        %v677 = vpop.f32.mrf.mxu0
        %v678 = vadd.f32 0.0, %v677
        %679 = vdwg.mxu0
        %680 = vmatpush.msra.mxu0 %v633
        %681 = vmatpush.msra.mxu0 %v630
        %682 = vmatpush.msra.mxu0 %v627
        %683 = vmatpush.msra.mxu0 %v624
        %684 = vmatpush.msra.mxu0 %v621
        %685 = vmatpush.msra.mxu0 %v618
        %686 = vmatpush.msra.mxu0 %v615
        %687 = vmatpush.msra.mxu0 %v612
        %688 = vmatpush.msra.mxu0 %v609
        %689 = vmatpush.msra.mxu0 %v606
        %690 = vmatpush.msra.mxu0 %v603
        %691 = vmatpush.msra.mxu0 %v600
        %692 = vmatpush.msra.mxu0 %v597
        %693 = vmatpush.msra.mxu0 %v594
        %694 = vmatpush.msra.mxu0 %v591
        %695 = vmatpush.msra.mxu0 %v588
        %696 = vmatmul.f32.gmra.mxu0 %v584
        %v697 = vpop.f32.mrf.mxu0
        %v698 = vadd.f32 0.0, %v697
        %699 = vmatmul.f32.gmra.mxu0 %v585
        %v700 = vpop.f32.mrf.mxu0
        %v701 = vadd.f32 0.0, %v700
        %702 = vdwg.mxu0
        %vm703 = vcmask 130048
        %v705 = vsel %vm703, %v572, 0
        %v708 = vsel %vm703, %v573, 0
        %710 = vmatpush.msra.mxu0 0.0
        %711 = vmatpush.msra.mxu0 0.0
        %712 = vmatpush.msra.mxu0 0.0
        %713 = vmatpush.msra.mxu0 0.0
        %714 = vmatpush.msra.mxu0 0.0
        %715 = vmatpush.msra.mxu0 0.0
        %716 = vmatpush.msra.mxu0 0.0
        %717 = vmatpush.msra.mxu0 0.0
        %718 = vmatpush.msra.mxu0 0.0
        %719 = vmatpush.msra.mxu0 0.0
        %720 = vmatpush.msra.mxu0 0.0
        %721 = vmatpush.msra.mxu0 0.0
        %722 = vmatpush.msra.mxu0 0.0
        %723 = vmatpush.msra.mxu0 0.0
        %724 = vmatpush.msra.mxu0 %v655
        %725 = vmatpush.msra.mxu0 %v652
        %726 = vmatmul.f32.gmra.mxu0 %v705
        %v727 = vpop.f32.mrf.mxu0
        %v728 = vadd.f32 0.0, %v727
        %729 = vmatmul.f32.gmra.mxu0 %v708
        %v730 = vpop.f32.mrf.mxu0
        %v731 = vadd.f32 0.0, %v730
        %732 = vdwg.mxu0
        %v733 = vadd.f32 %v675, %v728
        %v734 = vadd.f32 %v678, %v731
        %v736 = vsel %vm703, %v578, 0
        %v739 = vsel %vm703, %v579, 0
        %741 = vmatpush.msra.mxu0 0.0
        %742 = vmatpush.msra.mxu0 0.0
        %743 = vmatpush.msra.mxu0 0.0
        %744 = vmatpush.msra.mxu0 0.0
        %745 = vmatpush.msra.mxu0 0.0
        %746 = vmatpush.msra.mxu0 0.0
        %747 = vmatpush.msra.mxu0 0.0
        %748 = vmatpush.msra.mxu0 0.0
        %749 = vmatpush.msra.mxu0 0.0
        %750 = vmatpush.msra.mxu0 0.0
        %751 = vmatpush.msra.mxu0 0.0
        %752 = vmatpush.msra.mxu0 0.0
        %753 = vmatpush.msra.mxu0 0.0
        %754 = vmatpush.msra.mxu0 0.0
        %755 = vmatpush.msra.mxu0 %v701
        %756 = vmatpush.msra.mxu0 %v698
        %757 = vmatmul.f32.gmra.mxu0 %v736
        %v758 = vpop.f32.mrf.mxu0
        %v759 = vadd.f32 0.0, %v758
        %760 = vmatmul.f32.gmra.mxu0 %v739
        %v761 = vpop.f32.mrf.mxu0
        %v762 = vadd.f32 0.0, %v761
        %763 = vdwg.mxu0
        %v764 = vadd.f32 %v733, %v759
        %v765 = vadd.f32 %v734, %v762
        %v766 = vld [vmem:[%s3] sm:$0x1]
        %v768 = vperm.slane %v766, 0
        %v770 = vadd.f32 %v764, %v768
        %v771 = vadd.f32 %v765, %v768
        %v772 = vmax.f32 %v770, 0.0
        %v773 = vmax.f32 %v771, 0.0
        %v774 = vld [vmem:[#allocation7] sm:$0xff]
        %v775 = vld [vmem:[#allocation7 + $0x8] sm:$0xff]
        %v776 = vld [vmem:[#allocation7 + $0x10] sm:$0xff]
        %v777 = vld [vmem:[#allocation7 + $0x18] sm:$0xff]
        %v778 = vld [vmem:[#allocation7 + $0x20] sm:$0xff]
        %v779 = vld [vmem:[#allocation7 + $0x28] sm:$0xff]
        %v780 = vld [vmem:[#allocation7 + $0x30] sm:$0xff]
        %v781 = vld [vmem:[#allocation7 + $0x38] sm:$0xff]
        %v782 = vld [vmem:[#allocation7 + $0x40] sm:$0xff]
        %v783 = vld [vmem:[#allocation7 + $0x48] sm:$0xff]
        %v784 = vld [vmem:[#allocation7 + $0x50] sm:$0xff]
        %v785 = vld [vmem:[#allocation7 + $0x58] sm:$0xff]
        %v786 = vld [vmem:[#allocation7 + $0x60] sm:$0xff]
        %v787 = vld [vmem:[#allocation7 + $0x68] sm:$0xff]
        %v788 = vld [vmem:[#allocation7 + $0x70] sm:$0xff]
        %v789 = vld [vmem:[#allocation7 + $0x78] sm:$0xff]
        %v790 = vld [vmem:[#allocation7 + $0x80] sm:$0xff]
        %v791 = vld [vmem:[#allocation7 + $0x88] sm:$0xff]
        %v792 = vld [vmem:[#allocation7 + $0x90] sm:$0xff]
        %v793 = vld [vmem:[#allocation7 + $0x98] sm:$0xff]
        %v794 = vld [vmem:[#allocation7 + $0xa0] sm:$0xff]
        %v795 = vld [vmem:[#allocation7 + $0xa8] sm:$0xff]
        %v796 = vld [vmem:[#allocation7 + $0xb0] sm:$0xff]
        %v797 = vld [vmem:[#allocation7 + $0xb8] sm:$0xff]
        %v798 = vld [vmem:[#allocation7 + $0xc0] sm:$0xff]
        %v799 = vld [vmem:[#allocation7 + $0xc8] sm:$0xff]
        %v800 = vld [vmem:[#allocation7 + $0xd0] sm:$0xff]
        %v801 = vld [vmem:[#allocation7 + $0xd8] sm:$0xff]
        %v802 = vld [vmem:[#allocation7 + $0xe0] sm:$0xff]
        %v803 = vld [vmem:[#allocation7 + $0xe8] sm:$0xff]
        %v804 = vld [vmem:[#allocation7 + $0xf0] sm:$0xff]
        %v805 = vld [vmem:[#allocation7 + $0xf8] sm:$0xff]
        %v806 = vld [vmem:[#allocation7 + $0x100] sm:$0xff]
        %v807 = vld [vmem:[#allocation7 + $0x108] sm:$0xff]
        %v808 = vld [vmem:[#allocation7 + $0x110] sm:$0xff]
        %v809 = vld [vmem:[#allocation7 + $0x118] sm:$0xff]
        %v810 = vld [vmem:[#allocation7 + $0x120] sm:$0xff]
        %v811 = vld [vmem:[#allocation7 + $0x128] sm:$0xff]
        %v812 = vld [vmem:[#allocation7 + $0x130] sm:$0xff]
        %v813 = vld [vmem:[#allocation7 + $0x138] sm:$0xff]
        %v814 = vld [vmem:[#allocation7 + $0x140] sm:$0xff]
        %v815 = vld [vmem:[#allocation7 + $0x148] sm:$0xff]
        %v816 = vld [vmem:[#allocation7 + $0x150] sm:$0xff]
        %v817 = vld [vmem:[#allocation7 + $0x158] sm:$0xff]
        %v818 = vld [vmem:[#allocation7 + $0x160] sm:$0xff]
        %v819 = vld [vmem:[#allocation7 + $0x168] sm:$0xff]
        %v820 = vld [vmem:[#allocation7 + $0x170] sm:$0xff]
        %v821 = vld [vmem:[#allocation7 + $0x178] sm:$0xff]
        %822 = vmatpush.msra.mxu0 %v819
        %823 = vmatpush.msra.mxu0 %v816
        %824 = vmatpush.msra.mxu0 %v813
        %825 = vmatpush.msra.mxu0 %v810
        %826 = vmatpush.msra.mxu0 %v807
        %827 = vmatpush.msra.mxu0 %v804
        %828 = vmatpush.msra.mxu0 %v801
        %829 = vmatpush.msra.mxu0 %v798
        %830 = vmatpush.msra.mxu0 %v795
        %831 = vmatpush.msra.mxu0 %v792
        %832 = vmatpush.msra.mxu0 %v789
        %833 = vmatpush.msra.mxu0 %v786
        %834 = vmatpush.msra.mxu0 %v783
        %835 = vmatpush.msra.mxu0 %v780
        %836 = vmatpush.msra.mxu0 %v777
        %837 = vmatpush.msra.mxu0 %v774
        %838 = vmatmul.f32.gmra.mxu0 %v772
        %v839 = vpop.f32.mrf.mxu0
        %v840 = vadd.f32 0.0, %v839
        %841 = vmatmul.f32.gmra.mxu0 %v773
        %v842 = vpop.f32.mrf.mxu0
        %v843 = vadd.f32 0.0, %v842
        %844 = vdwg.mxu0
        %845 = vmatpush.msra.mxu0 %v820
        %846 = vmatpush.msra.mxu0 %v817
        %847 = vmatpush.msra.mxu0 %v814
        %848 = vmatpush.msra.mxu0 %v811
        %849 = vmatpush.msra.mxu0 %v808
        %850 = vmatpush.msra.mxu0 %v805
        %851 = vmatpush.msra.mxu0 %v802
        %852 = vmatpush.msra.mxu0 %v799
        %853 = vmatpush.msra.mxu0 %v796
        %854 = vmatpush.msra.mxu0 %v793
        %855 = vmatpush.msra.mxu0 %v790
        %856 = vmatpush.msra.mxu0 %v787
        %857 = vmatpush.msra.mxu0 %v784
        %858 = vmatpush.msra.mxu0 %v781
        %859 = vmatpush.msra.mxu0 %v778
        %860 = vmatpush.msra.mxu0 %v775
        %861 = vmatmul.f32.gmra.mxu0 %v772
        %v862 = vpop.f32.mrf.mxu0
        %v863 = vadd.f32 0.0, %v862
        %864 = vmatmul.f32.gmra.mxu0 %v773
        %v865 = vpop.f32.mrf.mxu0
        %v866 = vadd.f32 0.0, %v865
        %867 = vdwg.mxu0
        %868 = vmatpush.msra.mxu0 %v821
        %869 = vmatpush.msra.mxu0 %v818
        %870 = vmatpush.msra.mxu0 %v815
        %871 = vmatpush.msra.mxu0 %v812
        %872 = vmatpush.msra.mxu0 %v809
        %873 = vmatpush.msra.mxu0 %v806
        %874 = vmatpush.msra.mxu0 %v803
        %875 = vmatpush.msra.mxu0 %v800
        %876 = vmatpush.msra.mxu0 %v797
        %877 = vmatpush.msra.mxu0 %v794
        %878 = vmatpush.msra.mxu0 %v791
        %879 = vmatpush.msra.mxu0 %v788
        %880 = vmatpush.msra.mxu0 %v785
        %881 = vmatpush.msra.mxu0 %v782
        %882 = vmatpush.msra.mxu0 %v779
        %883 = vmatpush.msra.mxu0 %v776
        %884 = vmatmul.f32.gmra.mxu0 %v772
        %v885 = vpop.f32.mrf.mxu0
        %v886 = vadd.f32 0.0, %v885
        %887 = vmatmul.f32.gmra.mxu0 %v773
        %v888 = vpop.f32.mrf.mxu0
        %v889 = vadd.f32 0.0, %v888
        %890 = vdwg.mxu0
        %891 = vmatpush.msra.mxu0 0.0
        %892 = vmatpush.msra.mxu0 0.0
        %893 = vmatpush.msra.mxu0 0.0
        %894 = vmatpush.msra.mxu0 0.0
        %895 = vmatpush.msra.mxu0 0.0
        %896 = vmatpush.msra.mxu0 0.0
        %897 = vmatpush.msra.mxu0 0.0
        %898 = vmatpush.msra.mxu0 0.0
        %899 = vmatpush.msra.mxu0 0.0
        %900 = vmatpush.msra.mxu0 0.0
        %901 = vmatpush.msra.mxu0 0.0
        %902 = vmatpush.msra.mxu0 0.0
        %903 = vmatpush.msra.mxu0 0.0
        %904 = vmatpush.msra.mxu0 0.0
        %905 = vmatpush.msra.mxu0 %v843
        %906 = vmatpush.msra.mxu0 %v840
        %907 = vmatmul.f32.gmra.mxu0 %v705
        %v908 = vpop.f32.mrf.mxu0
        %v909 = vadd.f32 0.0, %v908
        %910 = vmatmul.f32.gmra.mxu0 %v708
        %v911 = vpop.f32.mrf.mxu0
        %v912 = vadd.f32 0.0, %v911
        %913 = vdwg.mxu0
        %v914 = vadd.f32 %v863, %v909
        %v915 = vadd.f32 %v866, %v912
        %916 = vmatpush.msra.mxu0 0.0
        %917 = vmatpush.msra.mxu0 0.0
        %918 = vmatpush.msra.mxu0 0.0
        %919 = vmatpush.msra.mxu0 0.0
        %920 = vmatpush.msra.mxu0 0.0
        %921 = vmatpush.msra.mxu0 0.0
        %922 = vmatpush.msra.mxu0 0.0
        %923 = vmatpush.msra.mxu0 0.0
        %924 = vmatpush.msra.mxu0 0.0
        %925 = vmatpush.msra.mxu0 0.0
        %926 = vmatpush.msra.mxu0 0.0
        %927 = vmatpush.msra.mxu0 0.0
        %928 = vmatpush.msra.mxu0 0.0
        %929 = vmatpush.msra.mxu0 0.0
        %930 = vmatpush.msra.mxu0 %v889
        %931 = vmatpush.msra.mxu0 %v886
        %932 = vmatmul.f32.gmra.mxu0 %v736
        %v933 = vpop.f32.mrf.mxu0
        %v934 = vadd.f32 0.0, %v933
        %935 = vmatmul.f32.gmra.mxu0 %v739
        %v936 = vpop.f32.mrf.mxu0
        %v937 = vadd.f32 0.0, %v936
        %938 = vdwg.mxu0
        %v939 = vadd.f32 %v914, %v934
        %v940 = vadd.f32 %v915, %v937
        %v941 = vld [vmem:[%s5] sm:$0x1]
        %v943 = vperm.slane %v941, 0
        %v945 = vadd.f32 %v939, %v943
        %v946 = vadd.f32 %v940, %v943
        %v947 = vadd.f32 %v945, %v582
        %v948 = vadd.f32 %v946, %v583
        %v949 = vadd.f32 %v580, %v947
        %v950 = vadd.f32 %v581, %v948
        %v951 = vmax.f32 %v949, 0.0
        %v952 = vmax.f32 %v950, 0.0
        %v953 = vld [vmem:[#allocation8] sm:$0xff]
        %v954 = vld [vmem:[#allocation8 + $0x8] sm:$0xff]
        %v955 = vld [vmem:[#allocation8 + $0x10] sm:$0xff]
        %v956 = vld [vmem:[#allocation8 + $0x18] sm:$0xff]
        %v957 = vld [vmem:[#allocation8 + $0x20] sm:$0xff]
        %v958 = vld [vmem:[#allocation8 + $0x28] sm:$0xff]
        %v959 = vld [vmem:[#allocation8 + $0x30] sm:$0xff]
        %v960 = vld [vmem:[#allocation8 + $0x38] sm:$0xff]
        %v961 = vld [vmem:[#allocation8 + $0x40] sm:$0xff]
        %v962 = vld [vmem:[#allocation8 + $0x48] sm:$0xff]
        %v963 = vld [vmem:[#allocation8 + $0x50] sm:$0xff]
        %v964 = vld [vmem:[#allocation8 + $0x58] sm:$0xff]
        %v965 = vld [vmem:[#allocation8 + $0x60] sm:$0xff]
        %v966 = vld [vmem:[#allocation8 + $0x68] sm:$0xff]
        %v967 = vld [vmem:[#allocation8 + $0x70] sm:$0xff]
        %v968 = vld [vmem:[#allocation8 + $0x78] sm:$0xff]
        %v969 = vld [vmem:[#allocation8 + $0x80] sm:$0xff]
        %v970 = vld [vmem:[#allocation8 + $0x88] sm:$0xff]
        %v971 = vld [vmem:[#allocation8 + $0x90] sm:$0xff]
        %v972 = vld [vmem:[#allocation8 + $0x98] sm:$0xff]
        %v973 = vld [vmem:[#allocation8 + $0xa0] sm:$0xff]
        %v974 = vld [vmem:[#allocation8 + $0xa8] sm:$0xff]
        %v975 = vld [vmem:[#allocation8 + $0xb0] sm:$0xff]
        %v976 = vld [vmem:[#allocation8 + $0xb8] sm:$0xff]
        %v977 = vld [vmem:[#allocation8 + $0xc0] sm:$0xff]
        %v978 = vld [vmem:[#allocation8 + $0xc8] sm:$0xff]
        %v979 = vld [vmem:[#allocation8 + $0xd0] sm:$0xff]
        %v980 = vld [vmem:[#allocation8 + $0xd8] sm:$0xff]
        %v981 = vld [vmem:[#allocation8 + $0xe0] sm:$0xff]
        %v982 = vld [vmem:[#allocation8 + $0xe8] sm:$0xff]
        %v983 = vld [vmem:[#allocation8 + $0xf0] sm:$0xff]
        %v984 = vld [vmem:[#allocation8 + $0xf8] sm:$0xff]
        %v985 = vld [vmem:[#allocation8 + $0x100] sm:$0xff]
        %v986 = vld [vmem:[#allocation8 + $0x108] sm:$0xff]
        %v987 = vld [vmem:[#allocation8 + $0x110] sm:$0xff]
        %v988 = vld [vmem:[#allocation8 + $0x118] sm:$0xff]
        %v989 = vld [vmem:[#allocation8 + $0x120] sm:$0xff]
        %v990 = vld [vmem:[#allocation8 + $0x128] sm:$0xff]
        %v991 = vld [vmem:[#allocation8 + $0x130] sm:$0xff]
        %v992 = vld [vmem:[#allocation8 + $0x138] sm:$0xff]
        %v993 = vld [vmem:[#allocation8 + $0x140] sm:$0xff]
        %v994 = vld [vmem:[#allocation8 + $0x148] sm:$0xff]
        %v995 = vld [vmem:[#allocation8 + $0x150] sm:$0xff]
        %v996 = vld [vmem:[#allocation8 + $0x158] sm:$0xff]
        %v997 = vld [vmem:[#allocation8 + $0x160] sm:$0xff]
        %v998 = vld [vmem:[#allocation8 + $0x168] sm:$0xff]
        %v999 = vld [vmem:[#allocation8 + $0x170] sm:$0xff]
        %v1000 = vld [vmem:[#allocation8 + $0x178] sm:$0xff]
        %1001 = vmatpush.msra.mxu0 %v998
        %1002 = vmatpush.msra.mxu0 %v995
        %1003 = vmatpush.msra.mxu0 %v992
        %1004 = vmatpush.msra.mxu0 %v989
        %1005 = vmatpush.msra.mxu0 %v986
        %1006 = vmatpush.msra.mxu0 %v983
        %1007 = vmatpush.msra.mxu0 %v980
        %1008 = vmatpush.msra.mxu0 %v977
        %1009 = vmatpush.msra.mxu0 %v974
        %1010 = vmatpush.msra.mxu0 %v971
        %1011 = vmatpush.msra.mxu0 %v968
        %1012 = vmatpush.msra.mxu0 %v965
        %1013 = vmatpush.msra.mxu0 %v962
        %1014 = vmatpush.msra.mxu0 %v959
        %1015 = vmatpush.msra.mxu0 %v956
        %1016 = vmatpush.msra.mxu0 %v953
        %1017 = vmatmul.f32.gmra.mxu0 %v951
        %v1018 = vpop.f32.mrf.mxu0
        %v1019 = vadd.f32 0.0, %v1018
        %1020 = vmatmul.f32.gmra.mxu0 %v952
        %v1021 = vpop.f32.mrf.mxu0
        %v1022 = vadd.f32 0.0, %v1021
        %1023 = vdwg.mxu0
        %1024 = vmatpush.msra.mxu0 %v999
        %1025 = vmatpush.msra.mxu0 %v996
        %1026 = vmatpush.msra.mxu0 %v993
        %1027 = vmatpush.msra.mxu0 %v990
        %1028 = vmatpush.msra.mxu0 %v987
        %1029 = vmatpush.msra.mxu0 %v984
        %1030 = vmatpush.msra.mxu0 %v981
        %1031 = vmatpush.msra.mxu0 %v978
        %1032 = vmatpush.msra.mxu0 %v975
        %1033 = vmatpush.msra.mxu0 %v972
        %1034 = vmatpush.msra.mxu0 %v969
        %1035 = vmatpush.msra.mxu0 %v966
        %1036 = vmatpush.msra.mxu0 %v963
        %1037 = vmatpush.msra.mxu0 %v960
        %1038 = vmatpush.msra.mxu0 %v957
        %1039 = vmatpush.msra.mxu0 %v954
        %1040 = vmatmul.f32.gmra.mxu0 %v951
        %v1041 = vpop.f32.mrf.mxu0
        %v1042 = vadd.f32 0.0, %v1041
        %1043 = vmatmul.f32.gmra.mxu0 %v952
        %v1044 = vpop.f32.mrf.mxu0
        %v1045 = vadd.f32 0.0, %v1044
        %1046 = vdwg.mxu0
        %1047 = vmatpush.msra.mxu0 %v1000
        %1048 = vmatpush.msra.mxu0 %v997
        %1049 = vmatpush.msra.mxu0 %v994
        %1050 = vmatpush.msra.mxu0 %v991
        %1051 = vmatpush.msra.mxu0 %v988
        %1052 = vmatpush.msra.mxu0 %v985
        %1053 = vmatpush.msra.mxu0 %v982
        %1054 = vmatpush.msra.mxu0 %v979
        %1055 = vmatpush.msra.mxu0 %v976
        %1056 = vmatpush.msra.mxu0 %v973
        %1057 = vmatpush.msra.mxu0 %v970
        %1058 = vmatpush.msra.mxu0 %v967
        %1059 = vmatpush.msra.mxu0 %v964
        %1060 = vmatpush.msra.mxu0 %v961
        %1061 = vmatpush.msra.mxu0 %v958
        %1062 = vmatpush.msra.mxu0 %v955
        %1063 = vmatmul.f32.gmra.mxu0 %v951
        %v1064 = vpop.f32.mrf.mxu0
        %v1065 = vadd.f32 0.0, %v1064
        %1066 = vmatmul.f32.gmra.mxu0 %v952
        %v1067 = vpop.f32.mrf.mxu0
        %v1068 = vadd.f32 0.0, %v1067
        %1069 = vdwg.mxu0
        %1070 = vmatpush.msra.mxu0 0.0
        %1071 = vmatpush.msra.mxu0 0.0
        %1072 = vmatpush.msra.mxu0 0.0
        %1073 = vmatpush.msra.mxu0 0.0
        %1074 = vmatpush.msra.mxu0 0.0
        %1075 = vmatpush.msra.mxu0 0.0
        %1076 = vmatpush.msra.mxu0 0.0
        %1077 = vmatpush.msra.mxu0 0.0
        %1078 = vmatpush.msra.mxu0 0.0
        %1079 = vmatpush.msra.mxu0 0.0
        %1080 = vmatpush.msra.mxu0 0.0
        %1081 = vmatpush.msra.mxu0 0.0
        %1082 = vmatpush.msra.mxu0 0.0
        %1083 = vmatpush.msra.mxu0 0.0
        %1084 = vmatpush.msra.mxu0 %v1022
        %1085 = vmatpush.msra.mxu0 %v1019
        %1086 = vmatmul.f32.gmra.mxu0 %v705
        %v1087 = vpop.f32.mrf.mxu0
        %v1088 = vadd.f32 0.0, %v1087
        %1089 = vmatmul.f32.gmra.mxu0 %v708
        %v1090 = vpop.f32.mrf.mxu0
        %v1091 = vadd.f32 0.0, %v1090
        %1092 = vdwg.mxu0
        %v1093 = vadd.f32 %v1042, %v1088
        %v1094 = vadd.f32 %v1045, %v1091
        %1095 = vmatpush.msra.mxu0 0.0
        %1096 = vmatpush.msra.mxu0 0.0
        %1097 = vmatpush.msra.mxu0 0.0
        %1098 = vmatpush.msra.mxu0 0.0
        %1099 = vmatpush.msra.mxu0 0.0
        %1100 = vmatpush.msra.mxu0 0.0
        %1101 = vmatpush.msra.mxu0 0.0
        %1102 = vmatpush.msra.mxu0 0.0
        %1103 = vmatpush.msra.mxu0 0.0
        %1104 = vmatpush.msra.mxu0 0.0
        %1105 = vmatpush.msra.mxu0 0.0
        %1106 = vmatpush.msra.mxu0 0.0
        %1107 = vmatpush.msra.mxu0 0.0
        %1108 = vmatpush.msra.mxu0 0.0
        %1109 = vmatpush.msra.mxu0 %v1068
        %1110 = vmatpush.msra.mxu0 %v1065
        %1111 = vmatmul.f32.gmra.mxu0 %v736
        %v1112 = vpop.f32.mrf.mxu0
        %v1113 = vadd.f32 0.0, %v1112
        %1114 = vmatmul.f32.gmra.mxu0 %v739
        %v1115 = vpop.f32.mrf.mxu0
        %v1116 = vadd.f32 0.0, %v1115
        %1117 = vdwg.mxu0
        %v1118 = vadd.f32 %v1093, %v1113
        %v1119 = vadd.f32 %v1094, %v1116
        %v1120 = vld [vmem:[%s7] sm:$0x1]
        %v1122 = vperm.slane %v1120, 0
        %v1124 = vadd.f32 %v1118, %v1122
        %v1125 = vadd.f32 %v1119, %v1122
        %v1126 = vmax.f32 %v1124, 0.0
        %v1127 = vmax.f32 %v1125, 0.0
        %v1128 = vld [vmem:[#allocation10] sm:$0xff]
        %v1129 = vld [vmem:[#allocation10 + $0x8] sm:$0xff]
        %v1130 = vld [vmem:[#allocation10 + $0x10] sm:$0xff]
        %v1131 = vld [vmem:[#allocation10 + $0x18] sm:$0xff]
        %v1132 = vld [vmem:[#allocation10 + $0x20] sm:$0xff]
        %v1133 = vld [vmem:[#allocation10 + $0x28] sm:$0xff]
        %v1134 = vld [vmem:[#allocation10 + $0x30] sm:$0xff]
        %v1135 = vld [vmem:[#allocation10 + $0x38] sm:$0xff]
        %v1136 = vld [vmem:[#allocation10 + $0x40] sm:$0xff]
        %v1137 = vld [vmem:[#allocation10 + $0x48] sm:$0xff]
        %v1138 = vld [vmem:[#allocation10 + $0x50] sm:$0xff]
        %v1139 = vld [vmem:[#allocation10 + $0x58] sm:$0xff]
        %v1140 = vld [vmem:[#allocation10 + $0x60] sm:$0xff]
        %v1141 = vld [vmem:[#allocation10 + $0x68] sm:$0xff]
        %v1142 = vld [vmem:[#allocation10 + $0x70] sm:$0xff]
        %v1143 = vld [vmem:[#allocation10 + $0x78] sm:$0xff]
        %v1144 = vld [vmem:[#allocation10 + $0x80] sm:$0xff]
        %v1145 = vld [vmem:[#allocation10 + $0x88] sm:$0xff]
        %v1146 = vld [vmem:[#allocation10 + $0x90] sm:$0xff]
        %v1147 = vld [vmem:[#allocation10 + $0x98] sm:$0xff]
        %v1148 = vld [vmem:[#allocation10 + $0xa0] sm:$0xff]
        %v1149 = vld [vmem:[#allocation10 + $0xa8] sm:$0xff]
        %v1150 = vld [vmem:[#allocation10 + $0xb0] sm:$0xff]
        %v1151 = vld [vmem:[#allocation10 + $0xb8] sm:$0xff]
        %v1152 = vld [vmem:[#allocation10 + $0xc0] sm:$0xff]
        %v1153 = vld [vmem:[#allocation10 + $0xc8] sm:$0xff]
        %v1154 = vld [vmem:[#allocation10 + $0xd0] sm:$0xff]
        %v1155 = vld [vmem:[#allocation10 + $0xd8] sm:$0xff]
        %v1156 = vld [vmem:[#allocation10 + $0xe0] sm:$0xff]
        %v1157 = vld [vmem:[#allocation10 + $0xe8] sm:$0xff]
        %v1158 = vld [vmem:[#allocation10 + $0xf0] sm:$0xff]
        %v1159 = vld [vmem:[#allocation10 + $0xf8] sm:$0xff]
        %v1160 = vld [vmem:[#allocation10 + $0x100] sm:$0xff]
        %v1161 = vld [vmem:[#allocation10 + $0x108] sm:$0xff]
        %v1162 = vld [vmem:[#allocation10 + $0x110] sm:$0xff]
        %v1163 = vld [vmem:[#allocation10 + $0x118] sm:$0xff]
        %v1164 = vld [vmem:[#allocation10 + $0x120] sm:$0xff]
        %v1165 = vld [vmem:[#allocation10 + $0x128] sm:$0xff]
        %v1166 = vld [vmem:[#allocation10 + $0x130] sm:$0xff]
        %v1167 = vld [vmem:[#allocation10 + $0x138] sm:$0xff]
        %v1168 = vld [vmem:[#allocation10 + $0x140] sm:$0xff]
        %v1169 = vld [vmem:[#allocation10 + $0x148] sm:$0xff]
        %v1170 = vld [vmem:[#allocation10 + $0x150] sm:$0xff]
        %v1171 = vld [vmem:[#allocation10 + $0x158] sm:$0xff]
        %v1172 = vld [vmem:[#allocation10 + $0x160] sm:$0xff]
        %v1173 = vld [vmem:[#allocation10 + $0x168] sm:$0xff]
        %v1174 = vld [vmem:[#allocation10 + $0x170] sm:$0xff]
        %v1175 = vld [vmem:[#allocation10 + $0x178] sm:$0xff]
        %1176 = vmatpush.msra.mxu0 %v1173
        %1177 = vmatpush.msra.mxu0 %v1170
        %1178 = vmatpush.msra.mxu0 %v1167
        %1179 = vmatpush.msra.mxu0 %v1164
        %1180 = vmatpush.msra.mxu0 %v1161
        %1181 = vmatpush.msra.mxu0 %v1158
        %1182 = vmatpush.msra.mxu0 %v1155
        %1183 = vmatpush.msra.mxu0 %v1152
        %1184 = vmatpush.msra.mxu0 %v1149
        %1185 = vmatpush.msra.mxu0 %v1146
        %1186 = vmatpush.msra.mxu0 %v1143
        %1187 = vmatpush.msra.mxu0 %v1140
        %1188 = vmatpush.msra.mxu0 %v1137
        %1189 = vmatpush.msra.mxu0 %v1134
        %1190 = vmatpush.msra.mxu0 %v1131
        %1191 = vmatpush.msra.mxu0 %v1128
        %1192 = vmatmul.f32.gmra.mxu0 %v1126
        %v1193 = vpop.f32.mrf.mxu0
        %v1194 = vadd.f32 0.0, %v1193
        %1195 = vmatmul.f32.gmra.mxu0 %v1127
        %v1196 = vpop.f32.mrf.mxu0
        %v1197 = vadd.f32 0.0, %v1196
        %1198 = vdwg.mxu0
        %1199 = vmatpush.msra.mxu0 %v1174
        %1200 = vmatpush.msra.mxu0 %v1171
        %1201 = vmatpush.msra.mxu0 %v1168
        %1202 = vmatpush.msra.mxu0 %v1165
        %1203 = vmatpush.msra.mxu0 %v1162
        %1204 = vmatpush.msra.mxu0 %v1159
        %1205 = vmatpush.msra.mxu0 %v1156
        %1206 = vmatpush.msra.mxu0 %v1153
        %1207 = vmatpush.msra.mxu0 %v1150
        %1208 = vmatpush.msra.mxu0 %v1147
        %1209 = vmatpush.msra.mxu0 %v1144
        %1210 = vmatpush.msra.mxu0 %v1141
        %1211 = vmatpush.msra.mxu0 %v1138
        %1212 = vmatpush.msra.mxu0 %v1135
        %1213 = vmatpush.msra.mxu0 %v1132
        %1214 = vmatpush.msra.mxu0 %v1129
        %1215 = vmatmul.f32.gmra.mxu0 %v1126
        %v1216 = vpop.f32.mrf.mxu0
        %v1217 = vadd.f32 0.0, %v1216
        %1218 = vmatmul.f32.gmra.mxu0 %v1127
        %v1219 = vpop.f32.mrf.mxu0
        %v1220 = vadd.f32 0.0, %v1219
        %1221 = vdwg.mxu0
        %1222 = vmatpush.msra.mxu0 %v1175
        %1223 = vmatpush.msra.mxu0 %v1172
        %1224 = vmatpush.msra.mxu0 %v1169
        %1225 = vmatpush.msra.mxu0 %v1166
        %1226 = vmatpush.msra.mxu0 %v1163
        %1227 = vmatpush.msra.mxu0 %v1160
        %1228 = vmatpush.msra.mxu0 %v1157
        %1229 = vmatpush.msra.mxu0 %v1154
        %1230 = vmatpush.msra.mxu0 %v1151
        %1231 = vmatpush.msra.mxu0 %v1148
        %1232 = vmatpush.msra.mxu0 %v1145
        %1233 = vmatpush.msra.mxu0 %v1142
        %1234 = vmatpush.msra.mxu0 %v1139
        %1235 = vmatpush.msra.mxu0 %v1136
        %1236 = vmatpush.msra.mxu0 %v1133
        %1237 = vmatpush.msra.mxu0 %v1130
        %1238 = vmatmul.f32.gmra.mxu0 %v1126
        %v1239 = vpop.f32.mrf.mxu0
        %v1240 = vadd.f32 0.0, %v1239
        %1241 = vmatmul.f32.gmra.mxu0 %v1127
        %v1242 = vpop.f32.mrf.mxu0
        %v1243 = vadd.f32 0.0, %v1242
        %1244 = vdwg.mxu0
        %1245 = vmatpush.msra.mxu0 0.0
        %1246 = vmatpush.msra.mxu0 0.0
        %1247 = vmatpush.msra.mxu0 0.0
        %1248 = vmatpush.msra.mxu0 0.0
        %1249 = vmatpush.msra.mxu0 0.0
        %1250 = vmatpush.msra.mxu0 0.0
        %1251 = vmatpush.msra.mxu0 0.0
        %1252 = vmatpush.msra.mxu0 0.0
        %1253 = vmatpush.msra.mxu0 0.0
        %1254 = vmatpush.msra.mxu0 0.0
        %1255 = vmatpush.msra.mxu0 0.0
        %1256 = vmatpush.msra.mxu0 0.0
        %1257 = vmatpush.msra.mxu0 0.0
        %1258 = vmatpush.msra.mxu0 0.0
        %1259 = vmatpush.msra.mxu0 %v1197
        %1260 = vmatpush.msra.mxu0 %v1194
        %1261 = vmatmul.f32.gmra.mxu0 %v705
        %v1262 = vpop.f32.mrf.mxu0
        %v1263 = vadd.f32 0.0, %v1262
        %1264 = vmatmul.f32.gmra.mxu0 %v708
        %v1265 = vpop.f32.mrf.mxu0
        %v1266 = vadd.f32 0.0, %v1265
        %1267 = vdwg.mxu0
        %v1268 = vadd.f32 %v1217, %v1263
        %v1269 = vadd.f32 %v1220, %v1266
        %1270 = vmatpush.msra.mxu0 0.0
        %1271 = vmatpush.msra.mxu0 0.0
        %1272 = vmatpush.msra.mxu0 0.0
        %1273 = vmatpush.msra.mxu0 0.0
        %1274 = vmatpush.msra.mxu0 0.0
        %1275 = vmatpush.msra.mxu0 0.0
        %1276 = vmatpush.msra.mxu0 0.0
        %1277 = vmatpush.msra.mxu0 0.0
        %1278 = vmatpush.msra.mxu0 0.0
        %1279 = vmatpush.msra.mxu0 0.0
        %1280 = vmatpush.msra.mxu0 0.0
        %1281 = vmatpush.msra.mxu0 0.0
        %1282 = vmatpush.msra.mxu0 0.0
        %1283 = vmatpush.msra.mxu0 0.0
        %1284 = vmatpush.msra.mxu0 %v1243
        %1285 = vmatpush.msra.mxu0 %v1240
        %1286 = vmatmul.f32.gmra.mxu0 %v736
        %v1287 = vpop.f32.mrf.mxu0
        %v1288 = vadd.f32 0.0, %v1287
        %1289 = vmatmul.f32.gmra.mxu0 %v739
        %v1290 = vpop.f32.mrf.mxu0
        %v1291 = vadd.f32 0.0, %v1290
        %1292 = vdwg.mxu0
        %v1293 = vadd.f32 %v1268, %v1288
        %v1294 = vadd.f32 %v1269, %v1291
        %v1295 = vld [vmem:[%s9] sm:$0x1]
        %v1297 = vperm.slane %v1295, 0
        %v1299 = vadd.f32 %v1293, %v1297
        %v1300 = vadd.f32 %v1294, %v1297
        %v1301 = vadd.f32 %v1299, %v949
        %v1302 = vadd.f32 %v1300, %v950
        %v1303 = vld [vmem:[%s10] sm:$0xff]
        %v1304 = vld [vmem:[%s10 + $0x8] sm:$0xff]
        %v1305 = vld [vmem:[%s10 + $0x10] sm:$0xff]
        %v1306 = vld [vmem:[%s10 + $0x18] sm:$0xff]
        %v1308 = vsel %vm703, %v1303, 0
        %v1311 = vsel %vm703, %v1304, 0
        %v1314 = vsel %vm703, %v1305, 0
        %v1317 = vsel %vm703, %v1306, 0
        %1319 = vmatpush.msra.mxu0 0.0
        %1320 = vmatpush.msra.mxu0 0.0
        %1321 = vmatpush.msra.mxu0 0.0
        %1322 = vmatpush.msra.mxu0 0.0
        %1323 = vmatpush.msra.mxu0 0.0
        %1324 = vmatpush.msra.mxu0 0.0
        %1325 = vmatpush.msra.mxu0 0.0
        %1326 = vmatpush.msra.mxu0 0.0
        %1327 = vmatpush.msra.mxu0 0.0
        %1328 = vmatpush.msra.mxu0 0.0
        %1329 = vmatpush.msra.mxu0 0.0
        %1330 = vmatpush.msra.mxu0 0.0
        %1331 = vmatpush.msra.mxu0 0.0
        %1332 = vmatpush.msra.mxu0 0.0
        %1333 = vmatpush.msra.mxu0 %v1302
        %1334 = vmatpush.msra.mxu0 %v1301
        %1335 = vmatmul.f32.gmra.mxu0 %v1308
        %v1336 = vpop.f32.mrf.mxu0
        %v1337 = vadd.f32 0.0, %v1336
        %1338 = vmatmul.f32.gmra.mxu0 %v1311
        %v1339 = vpop.f32.mrf.mxu0
        %v1340 = vadd.f32 0.0, %v1339
        %1341 = vmatmul.f32.gmra.mxu0 %v1314
        %v1342 = vpop.f32.mrf.mxu0
        %v1343 = vadd.f32 0.0, %v1342
        %1344 = vmatmul.f32.gmra.mxu0 %v1317
        %v1345 = vpop.f32.mrf.mxu0
        %v1346 = vadd.f32 0.0, %v1345
        %1347 = vdwg.mxu0
        %v1348 = vld [vmem:[#allocation11] sm:$0xff]
        %v1349 = vld [vmem:[#allocation11 + $0x8] sm:$0xff]
        %v1350 = vld [vmem:[#allocation11 + $0x10] sm:$0xff]
        %v1351 = vld [vmem:[#allocation11 + $0x18] sm:$0xff]
        %v1352 = vld [vmem:[#allocation11 + $0x20] sm:$0xff]
        %v1353 = vld [vmem:[#allocation11 + $0x28] sm:$0xff]
        %v1354 = vld [vmem:[#allocation11 + $0x30] sm:$0xff]
        %v1355 = vld [vmem:[#allocation11 + $0x38] sm:$0xff]
        %v1356 = vld [vmem:[#allocation11 + $0x40] sm:$0xff]
        %v1357 = vld [vmem:[#allocation11 + $0x48] sm:$0xff]
        %v1358 = vld [vmem:[#allocation11 + $0x50] sm:$0xff]
        %v1359 = vld [vmem:[#allocation11 + $0x58] sm:$0xff]
        %v1360 = vld [vmem:[#allocation11 + $0x60] sm:$0xff]
        %v1361 = vld [vmem:[#allocation11 + $0x68] sm:$0xff]
        %v1362 = vld [vmem:[#allocation11 + $0x70] sm:$0xff]
        %v1363 = vld [vmem:[#allocation11 + $0x78] sm:$0xff]
        %v1364 = vld [vmem:[#allocation11 + $0x80] sm:$0xff]
        %v1365 = vld [vmem:[#allocation11 + $0x88] sm:$0xff]
        %v1366 = vld [vmem:[#allocation11 + $0x90] sm:$0xff]
        %v1367 = vld [vmem:[#allocation11 + $0x98] sm:$0xff]
        %v1368 = vld [vmem:[#allocation11 + $0xa0] sm:$0xff]
        %v1369 = vld [vmem:[#allocation11 + $0xa8] sm:$0xff]
        %v1370 = vld [vmem:[#allocation11 + $0xb0] sm:$0xff]
        %v1371 = vld [vmem:[#allocation11 + $0xb8] sm:$0xff]
        %v1372 = vld [vmem:[#allocation11 + $0xc0] sm:$0xff]
        %v1373 = vld [vmem:[#allocation11 + $0xc8] sm:$0xff]
        %v1374 = vld [vmem:[#allocation11 + $0xd0] sm:$0xff]
        %v1375 = vld [vmem:[#allocation11 + $0xd8] sm:$0xff]
        %v1376 = vld [vmem:[#allocation11 + $0xe0] sm:$0xff]
        %v1377 = vld [vmem:[#allocation11 + $0xe8] sm:$0xff]
        %v1378 = vld [vmem:[#allocation11 + $0xf0] sm:$0xff]
        %v1379 = vld [vmem:[#allocation11 + $0xf8] sm:$0xff]
        %v1380 = vld [vmem:[%s12] sm:$0x3]
        %v1382 = vperm.slane %v1380, 0
        %v1383 = vperm.slane %v1380, 1
        %1386 = vmatpush.msra.mxu0 %v1378
        %1387 = vmatpush.msra.mxu0 %v1376
        %1388 = vmatpush.msra.mxu0 %v1374
        %1389 = vmatpush.msra.mxu0 %v1372
        %1390 = vmatpush.msra.mxu0 %v1370
        %1391 = vmatpush.msra.mxu0 %v1368
        %1392 = vmatpush.msra.mxu0 %v1366
        %1393 = vmatpush.msra.mxu0 %v1364
        %1394 = vmatpush.msra.mxu0 %v1362
        %1395 = vmatpush.msra.mxu0 %v1360
        %1396 = vmatpush.msra.mxu0 %v1358
        %1397 = vmatpush.msra.mxu0 %v1356
        %1398 = vmatpush.msra.mxu0 %v1354
        %1399 = vmatpush.msra.mxu0 %v1352
        %1400 = vmatpush.msra.mxu0 %v1350
        %1401 = vmatpush.msra.mxu0 %v1348
        %1402 = vmatmul.f32.gmra.mxu0 %v1337
        %v1403 = vpop.f32.mrf.mxu0
        %v1404 = vadd.f32 %v1382, %v1403
        %1405 = vmatmul.f32.gmra.mxu0 %v1340
        %v1406 = vpop.f32.mrf.mxu0
        %v1407 = vadd.f32 %v1382, %v1406
        %1408 = vmatmul.f32.gmra.mxu0 %v1343
        %v1409 = vpop.f32.mrf.mxu0
        %v1410 = vadd.f32 %v1382, %v1409
        %1411 = vmatmul.f32.gmra.mxu0 %v1346
        %v1412 = vpop.f32.mrf.mxu0
        %v1413 = vadd.f32 %v1382, %v1412
        %1414 = vdwg.mxu0
        %1415 = vmatpush.msra.mxu0 %v1379
        %1416 = vmatpush.msra.mxu0 %v1377
        %1417 = vmatpush.msra.mxu0 %v1375
        %1418 = vmatpush.msra.mxu0 %v1373
        %1419 = vmatpush.msra.mxu0 %v1371
        %1420 = vmatpush.msra.mxu0 %v1369
        %1421 = vmatpush.msra.mxu0 %v1367
        %1422 = vmatpush.msra.mxu0 %v1365
        %1423 = vmatpush.msra.mxu0 %v1363
        %1424 = vmatpush.msra.mxu0 %v1361
        %1425 = vmatpush.msra.mxu0 %v1359
        %1426 = vmatpush.msra.mxu0 %v1357
        %1427 = vmatpush.msra.mxu0 %v1355
        %1428 = vmatpush.msra.mxu0 %v1353
        %1429 = vmatpush.msra.mxu0 %v1351
        %1430 = vmatpush.msra.mxu0 %v1349
        %1431 = vmatmul.f32.gmra.mxu0 %v1337
        %v1432 = vpop.f32.mrf.mxu0
        %v1433 = vadd.f32 %v1383, %v1432
        %1434 = vmatmul.f32.gmra.mxu0 %v1340
        %v1435 = vpop.f32.mrf.mxu0
        %v1436 = vadd.f32 %v1383, %v1435
        %1437 = vmatmul.f32.gmra.mxu0 %v1343
        %v1438 = vpop.f32.mrf.mxu0
        %v1439 = vadd.f32 %v1383, %v1438
        %1440 = vmatmul.f32.gmra.mxu0 %v1346
        %v1441 = vpop.f32.mrf.mxu0
        %v1442 = vadd.f32 %v1383, %v1441
        %1443 = vdwg.mxu0
        %1444 = vst [vmem:[%s558] sm:$0xff] %v1404
        %1445 = vst [vmem:[%s558 + $0x8] sm:$0xff] %v1433
        %1446 = vst [vmem:[%s558 + $0x10] sm:$0xff] %v1407
        %1447 = vst [vmem:[%s558 + $0x18] sm:$0xff] %v1436
        %1448 = vst [vmem:[%s558 + $0x20] sm:$0xff] %v1410
        %1449 = vst [vmem:[%s558 + $0x28] sm:$0xff] %v1439
        %1450 = vst [vmem:[%s558 + $0x30] sm:$0xff] %v1413
        %1451 = vst [vmem:[%s558 + $0x38] sm:$0xff] %v1442
        %s1452 = sand.u32 %s324, 1
        %s1453 = scalar_lea.sflag [#allocation4], %s1452
        %s1454 = sand.u32 %s324, 1
        %s1455 = smul.addr %s1454, 64
        %s1456 = scalar_lea.vmem [#allocation13], %s1455
        // Predicated region
        $region97: #{tpu_custom_call.1} parent=71 // pred_check
          %p1457 = pneg %p334
        $region98: #{tpu_custom_call.1} parent=71 // pred_check_branch
          %1459 = sbr.rel (%p1457) target = $region100
        $region99: #{tpu_custom_call.1} parent=71 // pred_region
          %1461 = vsyncadd %s1453, 0
          %s1462 = smul.addr %s33, 8
          %s1463 = smul.addr %s1462, 8
          %s1464 = scalar_lea.hbm %s13, %s1463
          %s1465 = sshll.u32 %s1456, 4
          %s1466 = int_to_ptr.vmem [resolvable:$true] %s1465
          %s1467 = sshll.u32 %s1464, 4
          %s1468 = int_to_ptr.hbm [resolvable:$true] %s1467
          %1473 = dma.vmem_to_hbm [thread:$0]  %s1466, 1024, %s1468, %s1453, 256, 256, 16
        $region100: #{tpu_custom_call.1} parent=71 // pred_fallthru
          _
      $region72: #{tpu_custom_call.1} parent=5 // pred_fallthru
        _
      %p1474 = scmp.le.s32.totalorder 2, %s28
      // Predicated region
      $region101: #{tpu_custom_call.1} parent=5 // pred_check
        %p1475 = pneg %p1474
      $region102: #{tpu_custom_call.1} parent=5 // pred_check_branch
        %1477 = sbr.rel (%p1475) target = $region104
      $region103: #{tpu_custom_call.1} parent=5 // pred_region
        %s1478 = ssub.s32 %s28, 2
        // Predicated region
        $region105: #{tpu_custom_call.1} parent=103 // pred_check
          %p1479 = pneg %p340
        $region106: #{tpu_custom_call.1} parent=103 // pred_check_branch
          %1481 = sbr.rel (%p1479) target = $region108
        $region107: #{tpu_custom_call.1} parent=103 // pred_region
          %s1482 = sand.u32 %s325, 1
          %s1483 = scalar_lea.sflag [#allocation4], %s1482
          %s1484 = sand.u32 %s325, 1
          %s1485 = smul.addr %s1484, 64
          %s1486 = scalar_lea.vmem [#allocation13], %s1485
          %1488 = dma.done %s1483, 1024
        $region108: #{tpu_custom_call.1} parent=103 // pred_fallthru
          _
      $region104: #{tpu_custom_call.1} parent=5 // pred_fallthru
        _
    $region6: #{tpu_custom_call.1} parent=1 // loop_footer
      %s32 = sadd.s32 1, %s28
    $region7: #{tpu_custom_call.1} parent=1 // loop_footer_branch
      %27 = sbr.rel target = $region3
    $region8: #{tpu_custom_call.1} parent=1 // loop_exit
      _
    %1489 = vsyncpa [#allocation3], 1
    %s1490 = scalar_lea.sflag [#allocation3], 1
    %1491 = vsyncpa %s1490, 1
    %1492 = vsyncpa [#allocation6], 1
    %1493 = vsyncpa [#allocation9], 1
    %1494 = vsyncpa [#allocation12], 1
    %1495 = vsyncpa [#allocation4], 1
    %s1496 = scalar_lea.sflag [#allocation4], 1
    %1497 = vsyncpa %s1496, 1

</llo_original>
